<compile_context>
chip_gen: v7x
topology: tpu7x:2x2x1
jax: 0.10.0
libtpu: 0.0.40
codegen_flags: <defaults>
</compile_context>

<pallas_src>
import jax
import jax.numpy as jnp
from jax.experimental import pallas as pl
from jax.experimental.pallas import tpu as pltpu


def _self_attention_kernel(x_ref, wqkv_ref, out_ref, attn_ref):
    # x_ref:    (Bb, S, E)  input activations (native dtype: f32 or bf16)
    # wqkv_ref: (E, 3E)     fused, pre-transposed [W_Q^T/sqrt(E) | W_K^T | W_V^T]
    # out_ref:  (Bb, S, E)  attention output (x dtype)
    # attn_ref: (Bb, S, S)  attention weights (attn dtype, default f32)
    bb, s, e = x_ref.shape
    compute_dtype = x_ref.dtype

    # ---- Fused QKV projection: one MXU matmul with M = Bb*S, N = 3E. The
    # 1/sqrt(E) scale is already folded into the Q columns of the weight. ----
    x2d = x_ref[...].reshape(bb * s, e)                          # native dtype
    qkv = jnp.dot(x2d, wqkv_ref[...],
                  preferred_element_type=jnp.float32)            # (Bb*S, 3E) f32

    q = qkv[:, :e].reshape(bb, s, e).astype(compute_dtype)
    k = qkv[:, e:2 * e].reshape(bb, s, e).astype(compute_dtype)
    v = qkv[:, 2 * e:].reshape(bb, s, e).astype(compute_dtype)

    # ---- Scores: batched Q @ K^T with last-axis contraction (no transpose;
    # the MXU consumes K in place). f32 accumulation. ----
    scores = jnp.einsum("bqd,bkd->bqk", q, k,
                        preferred_element_type=jnp.float32)      # (Bb, S, S)

    # ---- Numerically-stable softmax, all math in f32. Exact reciprocal so the
    # stored attention rows sum to 1 (only S scalars per row go through it). ----
    m = jnp.max(scores, axis=-1, keepdims=True)
    exps = jnp.exp(scores - m)
    denom = jnp.sum(exps, axis=-1, keepdims=True)
    weights = exps * pl.reciprocal(denom)                        # (Bb, S, S) f32

    # ---- Context: weights @ V (batched), f32 accumulation. ----
    out = jnp.einsum("bqk,bkd->bqd", weights.astype(compute_dtype), v,
                     preferred_element_type=jnp.float32)         # (Bb, S, E)

    out_ref[...] = out.astype(out_ref.dtype)
    attn_ref[...] = weights.astype(attn_ref.dtype)


# Per-step working-set budget. Conservative enough that pipeline blocks +
# temporaries stay inside v7x's 64 MiB physical VMEM (with headroom); far
# below v5e/v6e's 128 MiB, where the explicit vmem_limit_bytes below unlocks it.
_VMEM_WORKSET_BUDGET_BYTES = 36 * 1024 * 1024


def _work_set_bytes(bb, seq, embed, x_itemsize, attn_itemsize):
    """Per-grid-step VMEM footprint: double-buffered pipeline blocks, the
    single-buffered fused weight, and the in-kernel f32 temporaries."""
    blocks = 2 * bb * seq * embed * x_itemsize           # x block (2 buffers)
    blocks += 2 * bb * seq * embed * x_itemsize          # out block (2 buffers)
    blocks += 2 * bb * seq * seq * attn_itemsize         # attn block (2 buffers)
    blocks += embed * 3 * embed * x_itemsize             # fused W_QKV (1 buffer)
    temps = bb * seq * 3 * embed * 4                     # f32 qkv
    temps += 3 * bb * seq * embed * x_itemsize           # q/k/v casts
    temps += 3 * bb * seq * seq * 4                      # f32 scores/exps/weights
    temps += bb * seq * embed * 4                        # f32 context accumulator
    return blocks + temps


def _pick_batch_block(batch, seq, embed, x_dtype, attn_dtype):
    """Largest divisor of `batch` that (a) fits the VMEM working-set budget and
    (b) leaves >= min(batch, 4) grid steps, so the BlockSpec pipeline has
    neighbouring steps to overlap with and v7x's 2 TensorCores both get work."""
    xi = jnp.dtype(x_dtype).itemsize
    ai = jnp.dtype(attn_dtype).itemsize
    min_steps = min(batch, 4)
    divisors = [d for d in range(1, batch + 1) if batch % d == 0]
    fitting = [d for d in divisors
               if _work_set_bytes(d, seq, embed, xi, ai) <= _VMEM_WORKSET_BUDGET_BYTES]
    pipelined = [d for d in fitting if batch // d >= min_steps]
    if pipelined:
        bb = max(pipelined)      # fill the MXU M dimension within the constraints
    else:
        bb = 1                   # even Bb=1 blows the budget; wrapper raises vmem limit
    return bb, _work_set_bytes(bb, seq, embed, xi, ai)


def self_attention(x, w_q, w_k, w_v, *, attn_dtype=jnp.float32,
                   vmem_limit_bytes=None):
    """x: (B, S, E); w_*: (E, E) in PyTorch (out_features, in_features) layout.

    Returns (output (B, S, E) in x.dtype, attention_weights (B, S, S) in
    attn_dtype).  Pass attn_dtype=jnp.bfloat16 to halve the dominant S^2 HBM
    writeback when exact f32 weights are not required downstream.
    """
    B, S, E = x.shape

    # Fuse + pre-transpose the three projections once in the wrapper, folding
    # 1/sqrt(E) into the Q columns:  x @ [W_Q^T/sqrt(E) | W_K^T | W_V^T].
    scale = 1.0 / (float(E) ** 0.5)
    w_qkv = jnp.concatenate([w_q.T * scale, w_k.T, w_v.T], axis=1).astype(x.dtype)

    Bb, work_bytes = _pick_batch_block(B, S, E, x.dtype, attn_dtype)

    if vmem_limit_bytes is None:
        # Counted working set + headroom. Overrides v5e/v6e's small default
        # scoped limits; the 36 MiB budget keeps this inside v7x's 64 MiB.
        vmem_limit_bytes = int(max(work_bytes + (8 << 20), 32 << 20))

    out_shapes = (
        jax.ShapeDtypeStruct((B, S, E), x.dtype),
        jax.ShapeDtypeStruct((B, S, S), jnp.dtype(attn_dtype)),
    )

    x_spec = pl.BlockSpec((Bb, S, E), lambda b: (b, 0, 0))
    out_spec = pl.BlockSpec((Bb, S, E), lambda b: (b, 0, 0))
    attn_spec = pl.BlockSpec((Bb, S, S), lambda b: (b, 0, 0))

    def build(w_spec):
        grid_spec = pltpu.PrefetchScalarGridSpec(
            num_scalar_prefetch=0,
            grid=(B // Bb,),
            in_specs=[x_spec, w_spec],
            out_specs=[out_spec, attn_spec],
        )
        return pl.pallas_call(
            _self_attention_kernel,
            out_shape=out_shapes,
            grid_spec=grid_spec,
            compiler_params=pltpu.CompilerParams(
                dimension_semantics=("parallel",),
                vmem_limit_bytes=vmem_limit_bytes,
            ),
        )

    # The fused weight is grid-invariant (constant index_map => no re-DMA).
    # Request a single pipeline buffer to save 3*E^2*itemsize bytes of VMEM;
    # fall back to the default double-buffered spec if this JAX version does
    # not accept pipeline_mode here.
    try:
        w_spec = pl.BlockSpec((E, 3 * E), lambda b: (0, 0),
                              pipeline_mode=pl.Buffered(1))
        return build(w_spec)(x, w_qkv)
    except Exception:
        w_spec = pl.BlockSpec((E, 3 * E), lambda b: (0, 0))
        return build(w_spec)(x, w_qkv)


def self_attention_reference(x, w_q, w_k, w_v):
    E = x.shape[-1]
    hi = jax.lax.Precision.HIGHEST
    xf = x.astype(jnp.float32)
    q = jnp.einsum("bse,oe->bso", xf, w_q.astype(jnp.float32), precision=hi)
    k = jnp.einsum("bse,oe->bso", xf, w_k.astype(jnp.float32), precision=hi)
    v = jnp.einsum("bse,oe->bso", xf, w_v.astype(jnp.float32), precision=hi)
    scores = jnp.einsum("bqe,bke->bqk", q, k, precision=hi) / (E ** 0.5)
    weights = jax.nn.softmax(scores, axis=-1)
    out = jnp.einsum("bqk,bke->bqe", weights, v, precision=hi)
    return out, weights


if __name__ == "__main__":
    # Lane-dense demo shapes (S and E multiples of 128) so every output slab is
    # an unmasked vector store; B=4 gives a grid of 4 steps (pipeline overlap,
    # and both v7x TensorCores busy) while still running instantly.
    B, S, E = 4, 128, 128  # batch, sequence length, embed_size

    key = jax.random.PRNGKey(0)
    kx, kq, kk, kv = jax.random.split(key, 4)

    x = jax.random.uniform(kx, (B, S, E), dtype=jnp.float32)
    # Deterministic "nn.Linear(embed_size, embed_size, bias=False)" weights,
    # PyTorch (out_features, in_features) layout, uniform(-1/sqrt(E), 1/sqrt(E)).
    bound = 1.0 / (E ** 0.5)
    w_q = jax.random.uniform(kq, (E, E), jnp.float32, -bound, bound)
    w_k = jax.random.uniform(kk, (E, E), jnp.float32, -bound, bound)
    w_v = jax.random.uniform(kv, (E, E), jnp.float32, -bound, bound)

    # ---- f32 path (default f32 attention weights, matches the PyTorch module) ----
    out, attn = self_attention(x, w_q, w_k, w_v)
    out = jax.block_until_ready(out)
    attn = jax.block_until_ready(attn)

    out_ref, attn_ref = self_attention_reference(x, w_q, w_k, w_v)
    assert out.shape == (B, S, E) and attn.shape == (B, S, S)
    assert attn.dtype == jnp.float32
    assert jnp.allclose(out, out_ref, atol=2e-2, rtol=2e-2)
    assert jnp.allclose(attn, attn_ref, atol=2e-3)
    assert jnp.allclose(jnp.sum(attn, axis=-1), 1.0, atol=1e-3)

    # ---- bf16 path (bf16 activations + bf16 attn writeback), loose tolerances ----
    out_bf, attn_bf = self_attention(
        x.astype(jnp.bfloat16), w_q.astype(jnp.bfloat16),
        w_k.astype(jnp.bfloat16), w_v.astype(jnp.bfloat16),
        attn_dtype=jnp.bfloat16)
    out_bf = jax.block_until_ready(out_bf)
    attn_bf = jax.block_until_ready(attn_bf)
    assert out_bf.dtype == jnp.bfloat16 and attn_bf.dtype == jnp.bfloat16
    assert jnp.allclose(out_bf.astype(jnp.float32), out_ref, atol=5e-2, rtol=5e-2)
    assert jnp.allclose(jnp.sum(attn_bf.astype(jnp.float32), axis=-1), 1.0, atol=2e-2)

    print("KERNEL_OK")
</pallas_src>

<mosaic_0001>
module attributes {stable_mosaic.version = 11 : i64} {
  func.func @_self_attention_kernel(%arg0: i32, %arg1: memref<1x128x128xf32, #tpu.memory_space<vmem>>, %arg2: memref<128x384xf32, #tpu.memory_space<vmem>>, %arg3: memref<1x128x128xf32, #tpu.memory_space<vmem>>, %arg4: memref<1x128x128xf32, #tpu.memory_space<vmem>>) attributes {dimension_semantics = [#tpu.dimension_semantics<parallel>], iteration_bounds = array<i64: 4>, scalar_prefetch = 0 : i64, scratch_operands = 0 : i64, tpu.core_type = #tpu.core_type<tc>, window_params = [{transform_indices = @transform_0, window_bounds = array<i64: 1, 128, 128>}, {pipeline_mode = #tpu.pipeline_mode<synchronous>, transform_indices = @transform_1, window_bounds = array<i64: 128, 384>}, {transform_indices = @transform_2, window_bounds = array<i64: 1, 128, 128>}, {transform_indices = @transform_3, window_bounds = array<i64: 1, 128, 128>}]} {
    %c0 = arith.constant 0 : index
    %c0_0 = arith.constant 0 : index
    %c0_1 = arith.constant 0 : index
    %0 = vector.load %arg1[%c0, %c0_0, %c0_1] : memref<1x128x128xf32, #tpu.memory_space<vmem>>, vector<1x128x128xf32>
    %1 = vector.shape_cast %0 : vector<1x128x128xf32> to vector<128x128xf32>
    %c0_2 = arith.constant 0 : index
    %c0_3 = arith.constant 0 : index
    %2 = vector.load %arg2[%c0_2, %c0_3] : memref<128x384xf32, #tpu.memory_space<vmem>>, vector<128x384xf32>
    %cst = arith.constant dense<0.000000e+00> : vector<128x384xf32>
    %3 = tpu.matmul %1, %2, %cst {dimension_numbers = #tpu.dot_dimension_numbers<[1], [0], [0], [1], [0, 0, 1, 1], [], []>} : vector<128x128xf32>, vector<128x384xf32>, vector<128x384xf32> -> vector<128x384xf32>
    %4 = vector.extract_strided_slice %3 {offsets = [0, 0], sizes = [128, 128], strides = [1, 1]} : vector<128x384xf32> to vector<128x128xf32>
    %5 = vector.shape_cast %4 : vector<128x128xf32> to vector<1x128x128xf32>
    %6 = vector.extract_strided_slice %3 {offsets = [0, 128], sizes = [128, 128], strides = [1, 1]} : vector<128x384xf32> to vector<128x128xf32>
    %7 = vector.shape_cast %6 : vector<128x128xf32> to vector<1x128x128xf32>
    %8 = vector.extract_strided_slice %3 {offsets = [0, 256], sizes = [128, 128], strides = [1, 1]} : vector<128x384xf32> to vector<128x128xf32>
    %9 = vector.shape_cast %8 : vector<128x128xf32> to vector<1x128x128xf32>
    "tpu.trace_start"() <{level = 10 : i32, message = "bqd,bkd->bqk"}> : () -> ()
    %cst_4 = arith.constant dense<0.000000e+00> : vector<1x128x128xf32>
    %10 = tpu.matmul %5, %7, %cst_4 {dimension_numbers = #tpu.dot_dimension_numbers<[2], [2], [1], [1], [0, 0, 0, 1, 1, 1], [0], [0]>} : vector<1x128x128xf32>, vector<1x128x128xf32>, vector<1x128x128xf32> -> vector<1x128x128xf32>
    "tpu.trace_stop"() : () -> ()
    %cst_5 = arith.constant dense<0xFF800000> : vector<1x128xf32>
    %11 = vector.multi_reduction <maximumf>, %10, %cst_5 [2] : vector<1x128x128xf32> to vector<1x128xf32>
    %12 = vector.shape_cast %11 : vector<1x128xf32> to vector<1x128x1xf32>
    %13 = vector.broadcast %12 : vector<1x128x1xf32> to vector<1x128x128xf32>
    %14 = arith.subf %10, %13 : vector<1x128x128xf32>
    %15 = math.exp %14 : vector<1x128x128xf32>
    %cst_6 = arith.constant dense<0.000000e+00> : vector<1x128xf32>
    %16 = vector.multi_reduction <add>, %15, %cst_6 [2] : vector<1x128x128xf32> to vector<1x128xf32>
    %17 = vector.shape_cast %16 : vector<1x128xf32> to vector<1x128x1xf32>
    %18 = tpu.reciprocal %17 : vector<1x128x1xf32> -> vector<1x128x1xf32>
    %19 = vector.broadcast %18 : vector<1x128x1xf32> to vector<1x128x128xf32>
    %20 = arith.mulf %15, %19 : vector<1x128x128xf32>
    "tpu.trace_start"() <{level = 10 : i32, message = "bqk,bkd->bqd"}> : () -> ()
    %cst_7 = arith.constant dense<0.000000e+00> : vector<1x128x128xf32>
    %21 = tpu.matmul %20, %9, %cst_7 {dimension_numbers = #tpu.dot_dimension_numbers<[2], [1], [1], [2], [0, 0, 0, 1, 1, 2], [0], [0]>} : vector<1x128x128xf32>, vector<1x128x128xf32>, vector<1x128x128xf32> -> vector<1x128x128xf32>
    "tpu.trace_stop"() : () -> ()
    %c0_8 = arith.constant 0 : index
    %c0_9 = arith.constant 0 : index
    %c0_10 = arith.constant 0 : index
    %22 = vector.load %arg3[%c0_8, %c0_9, %c0_10] : memref<1x128x128xf32, #tpu.memory_space<vmem>>, vector<1x128x128xf32>
    tpu.vector_store %arg3[%c0_8, %c0_9, %c0_10], %21 {strides = array<i32>} : memref<1x128x128xf32, #tpu.memory_space<vmem>>, vector<1x128x128xf32>,
    %c0_11 = arith.constant 0 : index
    %c0_12 = arith.constant 0 : index
    %c0_13 = arith.constant 0 : index
    %23 = vector.load %arg4[%c0_11, %c0_12, %c0_13] : memref<1x128x128xf32, #tpu.memory_space<vmem>>, vector<1x128x128xf32>
    tpu.vector_store %arg4[%c0_11, %c0_12, %c0_13], %20 {strides = array<i32>} : memref<1x128x128xf32, #tpu.memory_space<vmem>>, vector<1x128x128xf32>,
    return
  }
  func.func @transform_0(%arg0: i32) -> (i32, i32, i32) {
    %c0_i32 = arith.constant 0 : i32
    %c0_i32_0 = arith.constant 0 : i32
    %c0_i32_1 = arith.constant 0 : i32
    return %arg0, %c0_i32, %c0_i32_0 : i32, i32, i32
  }
  func.func @transform_1(%arg0: i32) -> (i32, i32) {
    %c0_i32 = arith.constant 0 : i32
    %c0_i32_0 = arith.constant 0 : i32
    %c0_i32_1 = arith.constant 0 : i32
    return %c0_i32, %c0_i32_0 : i32, i32
  }
  func.func @transform_2(%arg0: i32) -> (i32, i32, i32) {
    %c0_i32 = arith.constant 0 : i32
    %c0_i32_0 = arith.constant 0 : i32
    %c0_i32_1 = arith.constant 0 : i32
    return %arg0, %c0_i32, %c0_i32_0 : i32, i32, i32
  }
  func.func @transform_3(%arg0: i32) -> (i32, i32, i32) {
    %c0_i32 = arith.constant 0 : i32
    %c0_i32_0 = arith.constant 0 : i32
    %c0_i32_1 = arith.constant 0 : i32
    return %arg0, %c0_i32, %c0_i32_0 : i32, i32, i32
  }
}

module attributes {stable_mosaic.version = 11 : i64} {
  func.func @_self_attention_kernel(%arg0: i32, %arg1: memref<1x128x128xf32, #tpu.memory_space<vmem>>, %arg2: memref<128x384xf32, #tpu.memory_space<vmem>>, %arg3: memref<1x128x128xf32, #tpu.memory_space<vmem>>, %arg4: memref<1x128x128xf32, #tpu.memory_space<vmem>>) attributes {dimension_semantics = [#tpu.dimension_semantics<parallel>], iteration_bounds = array<i64: 4>, scalar_prefetch = 0 : i64, scratch_operands = 0 : i64, tpu.core_type = #tpu.core_type<tc>, window_params = [{transform_indices = @transform_0, window_bounds = array<i64: 1, 128, 128>}, {pipeline_mode = #tpu.pipeline_mode<synchronous>, transform_indices = @transform_1, window_bounds = array<i64: 128, 384>}, {transform_indices = @transform_2, window_bounds = array<i64: 1, 128, 128>}, {transform_indices = @transform_3, window_bounds = array<i64: 1, 128, 128>}]} {
    %c0 = arith.constant 0 : index
    %c0_0 = arith.constant 0 : index
    %c0_1 = arith.constant 0 : index
    %0 = vector.load %arg1[%c0, %c0_0, %c0_1] : memref<1x128x128xf32, #tpu.memory_space<vmem>>, vector<1x128x128xf32>
    %1 = vector.shape_cast %0 : vector<1x128x128xf32> to vector<128x128xf32>
    %c0_2 = arith.constant 0 : index
    %c0_3 = arith.constant 0 : index
    %2 = vector.load %arg2[%c0_2, %c0_3] : memref<128x384xf32, #tpu.memory_space<vmem>>, vector<128x384xf32>
    %cst = arith.constant dense<0.000000e+00> : vector<128x384xf32>
    %3 = tpu.matmul %1, %2, %cst {dimension_numbers = #tpu.dot_dimension_numbers<[1], [0], [0], [1], [0, 0, 1, 1], [], []>} : vector<128x128xf32>, vector<128x384xf32>, vector<128x384xf32> -> vector<128x384xf32>
    %4 = vector.extract_strided_slice %3 {offsets = [0, 0], sizes = [128, 128], strides = [1, 1]} : vector<128x384xf32> to vector<128x128xf32>
    %5 = vector.shape_cast %4 : vector<128x128xf32> to vector<1x128x128xf32>
    %6 = vector.extract_strided_slice %3 {offsets = [0, 128], sizes = [128, 128], strides = [1, 1]} : vector<128x384xf32> to vector<128x128xf32>
    %7 = vector.shape_cast %6 : vector<128x128xf32> to vector<1x128x128xf32>
    %8 = vector.extract_strided_slice %3 {offsets = [0, 256], sizes = [128, 128], strides = [1, 1]} : vector<128x384xf32> to vector<128x128xf32>
    %9 = vector.shape_cast %8 : vector<128x128xf32> to vector<1x128x128xf32>
    "tpu.trace_start"() <{level = 10 : i32, message = "bqd,bkd->bqk"}> : () -> ()
    %cst_4 = arith.constant dense<0.000000e+00> : vector<1x128x128xf32>
    %10 = tpu.matmul %5, %7, %cst_4 {dimension_numbers = #tpu.dot_dimension_numbers<[2], [2], [1], [1], [0, 0, 0, 1, 1, 1], [0], [0]>} : vector<1x128x128xf32>, vector<1x128x128xf32>, vector<1x128x128xf32> -> vector<1x128x128xf32>
    "tpu.trace_stop"() : () -> ()
    %cst_5 = arith.constant dense<0xFF800000> : vector<1x128xf32>
    %11 = vector.multi_reduction <maximumf>, %10, %cst_5 [2] : vector<1x128x128xf32> to vector<1x128xf32>
    %12 = vector.shape_cast %11 : vector<1x128xf32> to vector<1x128x1xf32>
    %13 = vector.broadcast %12 : vector<1x128x1xf32> to vector<1x128x128xf32>
    %14 = arith.subf %10, %13 : vector<1x128x128xf32>
    %15 = math.exp %14 : vector<1x128x128xf32>
    %cst_6 = arith.constant dense<0.000000e+00> : vector<1x128xf32>
    %16 = vector.multi_reduction <add>, %15, %cst_6 [2] : vector<1x128x128xf32> to vector<1x128xf32>
    %17 = vector.shape_cast %16 : vector<1x128xf32> to vector<1x128x1xf32>
    %18 = tpu.reciprocal %17 : vector<1x128x1xf32> -> vector<1x128x1xf32>
    %19 = vector.broadcast %18 : vector<1x128x1xf32> to vector<1x128x128xf32>
    %20 = arith.mulf %15, %19 : vector<1x128x128xf32>
    "tpu.trace_start"() <{level = 10 : i32, message = "bqk,bkd->bqd"}> : () -> ()
    %cst_7 = arith.constant dense<0.000000e+00> : vector<1x128x128xf32>
    %21 = tpu.matmul %20, %9, %cst_7 {dimension_numbers = #tpu.dot_dimension_numbers<[2], [1], [1], [2], [0, 0, 0, 1, 1, 2], [0], [0]>} : vector<1x128x128xf32>, vector<1x128x128xf32>, vector<1x128x128xf32> -> vector<1x128x128xf32>
    "tpu.trace_stop"() : () -> ()
    %c0_8 = arith.constant 0 : index
    %c0_9 = arith.constant 0 : index
    %c0_10 = arith.constant 0 : index
    %22 = vector.load %arg3[%c0_8, %c0_9, %c0_10] : memref<1x128x128xf32, #tpu.memory_space<vmem>>, vector<1x128x128xf32>
    tpu.vector_store %arg3[%c0_8, %c0_9, %c0_10], %21 {strides = array<i32>} : memref<1x128x128xf32, #tpu.memory_space<vmem>>, vector<1x128x128xf32>,
    %c0_11 = arith.constant 0 : index
    %c0_12 = arith.constant 0 : index
    %c0_13 = arith.constant 0 : index
    %23 = vector.load %arg4[%c0_11, %c0_12, %c0_13] : memref<1x128x128xf32, #tpu.memory_space<vmem>>, vector<1x128x128xf32>
    tpu.vector_store %arg4[%c0_11, %c0_12, %c0_13], %20 {strides = array<i32>} : memref<1x128x128xf32, #tpu.memory_space<vmem>>, vector<1x128x128xf32>,
    return
  }
  func.func @transform_0(%arg0: i32) -> (i32, i32, i32) {
    %c0_i32 = arith.constant 0 : i32
    %c0_i32_0 = arith.constant 0 : i32
    %c0_i32_1 = arith.constant 0 : i32
    return %arg0, %c0_i32, %c0_i32_0 : i32, i32, i32
  }
  func.func @transform_1(%arg0: i32) -> (i32, i32) {
    %c0_i32 = arith.constant 0 : i32
    %c0_i32_0 = arith.constant 0 : i32
    %c0_i32_1 = arith.constant 0 : i32
    return %c0_i32, %c0_i32_0 : i32, i32
  }
  func.func @transform_2(%arg0: i32) -> (i32, i32, i32) {
    %c0_i32 = arith.constant 0 : i32
    %c0_i32_0 = arith.constant 0 : i32
    %c0_i32_1 = arith.constant 0 : i32
    return %arg0, %c0_i32, %c0_i32_0 : i32, i32, i32
  }
  func.func @transform_3(%arg0: i32) -> (i32, i32, i32) {
    %c0_i32 = arith.constant 0 : i32
    %c0_i32_0 = arith.constant 0 : i32
    %c0_i32_1 = arith.constant 0 : i32
    return %arg0, %c0_i32, %c0_i32_0 : i32, i32, i32
  }
}

</mosaic_0001>

<llo_original>
// kernel: tpu_custom_call.1
$region0: #{tpu_custom_call.1}
  #allocation0 [shape = 'u32[]', space=smem, size = 0x4, offset = 0x4, fixed_abs, tag = 'smem constant byte address 0x4 - core index']
  #allocation1 [shape = 'u32[144,128]{1,0:T(1,128)}', space=vmem, size = 0x12000, scoped, tag = 'internal scratch']
  %s0 = inlined_call_operand.hbm [shape: f32[4,128,128], index: 0, kind: input, shape index: {}]
  %s1 = inlined_call_operand.hbm [shape: f32[128,384], index: 1, kind: input, shape index: {}]
  %s2 = inlined_call_operand.hbm [shape: f32[4,128,128], index: 2, kind: output, shape index: {0}]
  %s3 = inlined_call_operand.hbm [shape: f32[4,128,128], index: 3, kind: output, shape index: {1}]
  %4 = xla_tuple %s2, %s3
  %s5 = sld [smem:[#allocation0]]
  $region57: #{tpu_custom_call.1} parent=0
    _
  %s7 = ssub.s32 1, %s5
  %s8 = scalar_select 0, %s7, %s5
  $region1: #{tpu_custom_call.1} parent=0
    #allocation2 [shape = 'u8[131072]{0}', space=vmem, size = 0x20000, scoped, tag = 'input window, operand 0']
    #allocation3 [shape = 's32[2]{0}', space=sflag, size = 0x8, scoped, tag = 'scoped memory for tpu_custom_call.1']
    #allocation4 [shape = 's32[2]{0}', space=sflag, size = 0x8, scoped, tag = 'scoped memory for tpu_custom_call.1']
    #allocation5 [shape = 'u8[196608]{0}', space=vmem, size = 0x30000, scoped, tag = 'input window, operand 1, single buffered']
    #allocation6 [shape = 's32[1]{0}', space=sflag, size = 0x4, scoped, tag = 'scoped memory for tpu_custom_call.1']
    #allocation7 [shape = 'u8[131072]{0}', space=vmem, size = 0x20000, scoped, tag = 'output window, operand 0']
    #allocation8 [shape = 'u8[131072]{0}', space=vmem, size = 0x20000, scoped, tag = 'output window, operand 1']
    #allocation9 [shape = 's32[2]{0}', space=sflag, size = 0x8, scoped, tag = 'scoped memory for tpu_custom_call.1']
    %9 = vsyncpa [#allocation3], 0
    %s10 = scalar_lea.sflag [#allocation3], 1
    %11 = vsyncpa %s10, 0
    %12 = vsyncpa [#allocation6], 0
    %13 = vsyncpa [#allocation4], 0
    %s14 = scalar_lea.sflag [#allocation4], 1
    %15 = vsyncpa %s14, 0
    %16 = vsyncpa [#allocation9], 0
    %s17 = scalar_lea.sflag [#allocation9], 1
    %18 = vsyncpa %s17, 0
    loop: start=0, step=1, limit=6
    $region2: #{tpu_custom_call.1} parent=1 // loop_pre_header
      _
    $region3: #{tpu_custom_call.1} parent=1 // loop_header
      %s20 = sphi 0, %s24
      %p21 = scmp.ge.s32.totalorder %s20, 6
      %s30 = sphi 0, %s32
      %s33 = sphi 0, %s30
      %s34 = sphi 0, %s33
      %s50 = sphi 0, %s34
      %s54 = sphi 0, %s54
      %s56 = sphi 0, %s54
      %s57 = sphi 0, %s56
      %s71 = sphi 0, %s57
      %s77 = sphi 0, %s79
      %s80 = sphi 0, %s77
      %s81 = sphi 0, %s80
      %s97 = sphi 0, %s81
      %s103 = sphi 0, %s105
      %s106 = sphi 0, %s103
      %s107 = sphi 0, %s106
      %s123 = sphi 0, %s107
    $region4: #{tpu_custom_call.1} parent=1 // loop_header_branch
      %23 = sbr.rel (%p21) target = $region8
    $region5: #{tpu_custom_call.1} parent=1 // loop_body
      %s25 = ssub.s32 %s20, 1
      %s26 = ssub.s32 %s20, 2
      %s27 = sadd.s32 %s20, 1
      %s28 = ssub.s32 %s20, %s27
      %p29 = scmp.eq.s32.totalorder %s28, 0
      %s31 = sadd.s32 %s30, 1
      %s32 = scalar_select %p29, %s30, %s31
      %p35 = pneg %p29
      %p36 = scmp.eq.s32.totalorder %s20, 3
      %p37 = por %p35, %p36
      %p38 = scmp.ne.s32.totalorder %s30, %s33
      %p39 = scmp.eq.s32.totalorder %s20, 0
      %p40 = por %p38, %p39
      %p41 = scmp.ne.s32.totalorder %s30, %s33
      %p42 = scmp.eq.s32.totalorder %s25, 3
      %p43 = por %p41, %p42
      %p44 = scmp.ne.s32.totalorder %s33, %s34
      %p45 = scmp.eq.s32.totalorder %s25, 0
      %p46 = por %p44, %p45
      %p47 = scmp.ne.s32.totalorder %s33, %s34
      %p48 = scmp.eq.s32.totalorder %s26, 3
      %p49 = por %p47, %p48
      %p51 = scmp.ne.s32.totalorder %s34, %s50
      %p52 = scmp.eq.s32.totalorder %s26, 0
      %p53 = por %p51, %p52
      %s55 = sadd.s32 %s54, 1
      %p58 = scmp.eq.s32.totalorder %s20, 3
      %p59 = scmp.ne.s32.totalorder %s54, %s56
      %p60 = scmp.eq.s32.totalorder %s20, 0
      %p61 = por %p59, %p60
      %p62 = scmp.ne.s32.totalorder %s54, %s56
      %p63 = scmp.eq.s32.totalorder %s25, 3
      %p64 = por %p62, %p63
      %p65 = scmp.ne.s32.totalorder %s56, %s57
      %p66 = scmp.eq.s32.totalorder %s25, 0
      %p67 = por %p65, %p66
      %p68 = scmp.ne.s32.totalorder %s56, %s57
      %p69 = scmp.eq.s32.totalorder %s26, 3
      %p70 = por %p68, %p69
      %p72 = scmp.ne.s32.totalorder %s57, %s71
      %p73 = scmp.eq.s32.totalorder %s26, 0
      %p74 = por %p72, %p73
      %s75 = ssub.s32 %s20, %s27
      %p76 = scmp.eq.s32.totalorder %s75, 0
      %s78 = sadd.s32 %s77, 1
      %s79 = scalar_select %p76, %s77, %s78
      %p82 = pneg %p76
      %p83 = scmp.eq.s32.totalorder %s20, 3
      %p84 = por %p82, %p83
      %p85 = scmp.ne.s32.totalorder %s77, %s80
      %p86 = scmp.eq.s32.totalorder %s20, 0
      %p87 = por %p85, %p86
      %p88 = scmp.ne.s32.totalorder %s77, %s80
      %p89 = scmp.eq.s32.totalorder %s25, 3
      %p90 = por %p88, %p89
      %p91 = scmp.ne.s32.totalorder %s80, %s81
      %p92 = scmp.eq.s32.totalorder %s25, 0
      %p93 = por %p91, %p92
      %p94 = scmp.ne.s32.totalorder %s80, %s81
      %p95 = scmp.eq.s32.totalorder %s26, 3
      %p96 = por %p94, %p95
      %p98 = scmp.ne.s32.totalorder %s81, %s97
      %p99 = scmp.eq.s32.totalorder %s26, 0
      %p100 = por %p98, %p99
      %s101 = ssub.s32 %s20, %s27
      %p102 = scmp.eq.s32.totalorder %s101, 0
      %s104 = sadd.s32 %s103, 1
      %s105 = scalar_select %p102, %s103, %s104
      %p108 = pneg %p102
      %p109 = scmp.eq.s32.totalorder %s20, 3
      %p110 = por %p108, %p109
      %p111 = scmp.ne.s32.totalorder %s103, %s106
      %p112 = scmp.eq.s32.totalorder %s20, 0
      %p113 = por %p111, %p112
      %p114 = scmp.ne.s32.totalorder %s103, %s106
      %p115 = scmp.eq.s32.totalorder %s25, 3
      %p116 = por %p114, %p115
      %p117 = scmp.ne.s32.totalorder %s106, %s107
      %p118 = scmp.eq.s32.totalorder %s25, 0
      %p119 = por %p117, %p118
      %p120 = scmp.ne.s32.totalorder %s106, %s107
      %p121 = scmp.eq.s32.totalorder %s26, 3
      %p122 = por %p120, %p121
      %p124 = scmp.ne.s32.totalorder %s107, %s123
      %p125 = scmp.eq.s32.totalorder %s26, 0
      %p126 = por %p124, %p125
      %p127 = scmp.le.s32.totalorder 1, %s20
      %p128 = scmp.lt.s32.totalorder %s20, 5
      %p129 = pnand %p127, %p128
      %p130 = pneg %p129
      // Predicated region
      $region9: #{tpu_custom_call.1} parent=5 // pred_check
        _
      $region10: #{tpu_custom_call.1} parent=5 // pred_check_branch
        %132 = sbr.rel (%p129) target = $region12
      $region11: #{tpu_custom_call.1} parent=5 // pred_region
        %s133 = ssub.s32 %s20, 1
        // Predicated region
        $region13: #{tpu_custom_call.1} parent=11 // pred_check
          %p134 = pneg %p67
        $region14: #{tpu_custom_call.1} parent=11 // pred_check_branch
          %136 = sbr.rel (%p134) target = $region16
        $region15: #{tpu_custom_call.1} parent=11 // pred_region
          %s138 = ssub.s32 6144, 6144
          %139 = vsyncadd [#allocation6], %s138
          %s140 = sshll.u32 [#allocation5], 4
          %s141 = int_to_ptr.vmem [resolvable:$true] %s140
          %146 = dma.hbm_to_vmem [thread:$0]  %s1, 6144, %s141, [#allocation6], 384, 384, 24
        $region16: #{tpu_custom_call.1} parent=11 // pred_fallthru
          _
      $region12: #{tpu_custom_call.1} parent=5 // pred_fallthru
        _
      %p147 = scmp.lt.s32.totalorder %s20, 4
      // Predicated region
      $region17: #{tpu_custom_call.1} parent=5 // pred_check
        %p148 = pneg %p147
      $region18: #{tpu_custom_call.1} parent=5 // pred_check_branch
        %150 = sbr.rel (%p148) target = $region20
      $region19: #{tpu_custom_call.1} parent=5 // pred_region
        // Predicated region
        $region21: #{tpu_custom_call.1} parent=19 // pred_check
          %p151 = pneg %p40
        $region22: #{tpu_custom_call.1} parent=19 // pred_check_branch
          %153 = sbr.rel (%p151) target = $region24
        $region23: #{tpu_custom_call.1} parent=19 // pred_region
          %s154 = sand.u32 %s30, 1
          %s155 = scalar_lea.sflag [#allocation3], %s154
          %s156 = sand.u32 %s30, 1
          %s157 = smul.addr %s156, 128
          %s158 = scalar_lea.vmem [#allocation2], %s157
          %s160 = ssub.s32 2048, 2048
          %161 = vsyncadd %s155, %s160
          %s162 = smul.addr %s20, 16
          %s163 = smul.addr %s162, 128
          %s164 = scalar_lea.hbm %s0, %s163
          %s165 = sshll.u32 %s158, 4
          %s166 = int_to_ptr.vmem [resolvable:$true] %s165
          %171 = dma.hbm_to_vmem [thread:$0]  %s164, 2048, %s166, %s155, 128, 128, 8
        $region24: #{tpu_custom_call.1} parent=19 // pred_fallthru
          _
      $region20: #{tpu_custom_call.1} parent=5 // pred_fallthru
        _
      %p172 = scmp.le.s32.totalorder 1, %s20
      %p173 = scmp.lt.s32.totalorder %s20, 5
      %p174 = pnand %p172, %p173
      %p175 = pneg %p174
      // Predicated region
      $region25: #{tpu_custom_call.1} parent=5 // pred_check
        _
      $region26: #{tpu_custom_call.1} parent=5 // pred_check_branch
        %177 = sbr.rel (%p174) target = $region28
      $region27: #{tpu_custom_call.1} parent=5 // pred_region
        %s178 = ssub.s32 %s20, 1
        %s179 = sand.u32 %s33, 1
        %s180 = scalar_lea.sflag [#allocation3], %s179
        %s181 = sand.u32 %s33, 1
        %s182 = smul.addr %s181, 128
        %s183 = scalar_lea.vmem [#allocation2], %s182
        // Predicated region
        $region29: #{tpu_custom_call.1} parent=27 // pred_check
          %p184 = pneg %p46
        $region30: #{tpu_custom_call.1} parent=27 // pred_check_branch
          %186 = sbr.rel (%p184) target = $region32
        $region31: #{tpu_custom_call.1} parent=27 // pred_region
          %187 = dma.done %s180, 2048
        $region32: #{tpu_custom_call.1} parent=27 // pred_fallthru
          _
        // Predicated region
        $region33: #{tpu_custom_call.1} parent=27 // pred_check
          %p188 = pneg %p67
        $region34: #{tpu_custom_call.1} parent=27 // pred_check_branch
          %190 = sbr.rel (%p188) target = $region36
        $region35: #{tpu_custom_call.1} parent=27 // pred_region
          %191 = dma.done [#allocation6], 6144
        $region36: #{tpu_custom_call.1} parent=27 // pred_fallthru
          _
        %s192 = sand.u32 %s33, 1
        %s193 = scalar_lea.sflag [#allocation3], %s192
        %s194 = sand.u32 %s33, 1
        %s195 = smul.addr %s194, 128
        %s196 = scalar_lea.vmem [#allocation2], %s195
        %p197 = pneg %p46
        %p198 = pneg %p43
        %p199 = pneg %p67
        %p200 = pneg %p64
        %p201 = pneg %p93
        %p202 = pneg %p90
        %s203 = sand.u32 %s80, 1
        %s204 = scalar_lea.sflag [#allocation4], %s203
        %s205 = sand.u32 %s80, 1
        %s206 = smul.addr %s205, 128
        %s207 = scalar_lea.vmem [#allocation7], %s206
        %p208 = pneg %p119
        %p209 = pneg %p116
        %s210 = sand.u32 %s106, 1
        %s211 = scalar_lea.sflag [#allocation9], %s210
        %s212 = sand.u32 %s106, 1
        %s213 = smul.addr %s212, 128
        %s214 = scalar_lea.vmem [#allocation8], %s213
        %v215 = vld [vmem:[%s183] sm:$0xff]
        %v216 = vld [vmem:[%s183 + $0x8] sm:$0xff]
        %v217 = vld [vmem:[%s183 + $0x10] sm:$0xff]
        %v218 = vld [vmem:[%s183 + $0x18] sm:$0xff]
        %v219 = vld [vmem:[%s183 + $0x20] sm:$0xff]
        %v220 = vld [vmem:[%s183 + $0x28] sm:$0xff]
        %v221 = vld [vmem:[%s183 + $0x30] sm:$0xff]
        %v222 = vld [vmem:[%s183 + $0x38] sm:$0xff]
        %v223 = vld [vmem:[%s183 + $0x40] sm:$0xff]
        %v224 = vld [vmem:[%s183 + $0x48] sm:$0xff]
        %v225 = vld [vmem:[%s183 + $0x50] sm:$0xff]
        %v226 = vld [vmem:[%s183 + $0x58] sm:$0xff]
        %v227 = vld [vmem:[%s183 + $0x60] sm:$0xff]
        %v228 = vld [vmem:[%s183 + $0x68] sm:$0xff]
        %v229 = vld [vmem:[%s183 + $0x70] sm:$0xff]
        %v230 = vld [vmem:[%s183 + $0x78] sm:$0xff]
        %v231 = vld [vmem:[#allocation5] sm:$0xff]
        %v232 = vld [vmem:[#allocation5 + $0x8] sm:$0xff]
        %v233 = vld [vmem:[#allocation5 + $0x10] sm:$0xff]
        %v234 = vld [vmem:[#allocation5 + $0x18] sm:$0xff]
        %v235 = vld [vmem:[#allocation5 + $0x20] sm:$0xff]
        %v236 = vld [vmem:[#allocation5 + $0x28] sm:$0xff]
        %v237 = vld [vmem:[#allocation5 + $0x30] sm:$0xff]
        %v238 = vld [vmem:[#allocation5 + $0x38] sm:$0xff]
        %v239 = vld [vmem:[#allocation5 + $0x40] sm:$0xff]
        %v240 = vld [vmem:[#allocation5 + $0x48] sm:$0xff]
        %v241 = vld [vmem:[#allocation5 + $0x50] sm:$0xff]
        %v242 = vld [vmem:[#allocation5 + $0x58] sm:$0xff]
        %v243 = vld [vmem:[#allocation5 + $0x60] sm:$0xff]
        %v244 = vld [vmem:[#allocation5 + $0x68] sm:$0xff]
        %v245 = vld [vmem:[#allocation5 + $0x70] sm:$0xff]
        %v246 = vld [vmem:[#allocation5 + $0x78] sm:$0xff]
        %v247 = vld [vmem:[#allocation5 + $0x80] sm:$0xff]
        %v248 = vld [vmem:[#allocation5 + $0x88] sm:$0xff]
        %v249 = vld [vmem:[#allocation5 + $0x90] sm:$0xff]
        %v250 = vld [vmem:[#allocation5 + $0x98] sm:$0xff]
        %v251 = vld [vmem:[#allocation5 + $0xa0] sm:$0xff]
        %v252 = vld [vmem:[#allocation5 + $0xa8] sm:$0xff]
        %v253 = vld [vmem:[#allocation5 + $0xb0] sm:$0xff]
        %v254 = vld [vmem:[#allocation5 + $0xb8] sm:$0xff]
        %v255 = vld [vmem:[#allocation5 + $0xc0] sm:$0xff]
        %v256 = vld [vmem:[#allocation5 + $0xc8] sm:$0xff]
        %v257 = vld [vmem:[#allocation5 + $0xd0] sm:$0xff]
        %v258 = vld [vmem:[#allocation5 + $0xd8] sm:$0xff]
        %v259 = vld [vmem:[#allocation5 + $0xe0] sm:$0xff]
        %v260 = vld [vmem:[#allocation5 + $0xe8] sm:$0xff]
        %v261 = vld [vmem:[#allocation5 + $0xf0] sm:$0xff]
        %v262 = vld [vmem:[#allocation5 + $0xf8] sm:$0xff]
        %v263 = vld [vmem:[#allocation5 + $0x100] sm:$0xff]
        %v264 = vld [vmem:[#allocation5 + $0x108] sm:$0xff]
        %v265 = vld [vmem:[#allocation5 + $0x110] sm:$0xff]
        %v266 = vld [vmem:[#allocation5 + $0x118] sm:$0xff]
        %v267 = vld [vmem:[#allocation5 + $0x120] sm:$0xff]
        %v268 = vld [vmem:[#allocation5 + $0x128] sm:$0xff]
        %v269 = vld [vmem:[#allocation5 + $0x130] sm:$0xff]
        %v270 = vld [vmem:[#allocation5 + $0x138] sm:$0xff]
        %v271 = vld [vmem:[#allocation5 + $0x140] sm:$0xff]
        %v272 = vld [vmem:[#allocation5 + $0x148] sm:$0xff]
        %v273 = vld [vmem:[#allocation5 + $0x150] sm:$0xff]
        %v274 = vld [vmem:[#allocation5 + $0x158] sm:$0xff]
        %v275 = vld [vmem:[#allocation5 + $0x160] sm:$0xff]
        %v276 = vld [vmem:[#allocation5 + $0x168] sm:$0xff]
        %v277 = vld [vmem:[#allocation5 + $0x170] sm:$0xff]
        %v278 = vld [vmem:[#allocation5 + $0x178] sm:$0xff]
        %279 = vmatprep.subr.mxu0 %v232
        %280 = vmatpush1.msra.mxu0 %v231
        %281 = vmatprep.subr.mxu0 %v235
        %282 = vmatpush1.msra.mxu0 %v234
        %283 = vmatprep.subr.mxu0 %v238
        %284 = vmatpush1.msra.mxu0 %v237
        %285 = vmatprep.subr.mxu0 %v241
        %286 = vmatpush1.msra.mxu0 %v240
        %287 = vmatprep.subr.mxu0 %v244
        %288 = vmatpush1.msra.mxu0 %v243
        %289 = vmatprep.subr.mxu0 %v247
        %290 = vmatpush1.msra.mxu0 %v246
        %291 = vmatprep.subr.mxu0 %v250
        %292 = vmatpush1.msra.mxu0 %v249
        %293 = vmatprep.subr.mxu0 %v253
        %294 = vmatpush1.msra.mxu0 %v252
        %295 = vmatprep.subr.mxu0 %v256
        %296 = vmatpush1.msra.mxu0 %v255
        %297 = vmatprep.subr.mxu0 %v259
        %298 = vmatpush1.msra.mxu0 %v258
        %299 = vmatprep.subr.mxu0 %v262
        %300 = vmatpush1.msra.mxu0 %v261
        %301 = vmatprep.subr.mxu0 %v265
        %302 = vmatpush1.msra.mxu0 %v264
        %303 = vmatprep.subr.mxu0 %v268
        %304 = vmatpush1.msra.mxu0 %v267
        %305 = vmatprep.subr.mxu0 %v271
        %306 = vmatpush1.msra.mxu0 %v270
        %307 = vmatprep.subr.mxu0 %v274
        %308 = vmatpush1.msra.mxu0 %v273
        %309 = vmatprep.subr.mxu0 %v277
        %310 = vmatpush1.msra.mxu0 %v276
        %311 = vmatprep.subr.mxu0 0.0
        %312 = vmatpush1.msra.mxu0 0.0
        %313 = vmatprep.subr.mxu0 0.0
        %314 = vmatpush1.msra.mxu0 0.0
        %315 = vmatprep.subr.mxu0 0.0
        %316 = vmatpush1.msra.mxu0 0.0
        %317 = vmatprep.subr.mxu0 0.0
        %318 = vmatpush1.msra.mxu0 0.0
        %319 = vmatprep.subr.mxu0 0.0
        %320 = vmatpush1.msra.mxu0 0.0
        %321 = vmatprep.subr.mxu0 0.0
        %322 = vmatpush1.msra.mxu0 0.0
        %323 = vmatprep.subr.mxu0 0.0
        %324 = vmatpush1.msra.mxu0 0.0
        %325 = vmatprep.subr.mxu0 0.0
        %326 = vmatpush1.msra.mxu0 0.0
        %327 = vmatprep.subr.mxu0 0.0
        %328 = vmatpush1.msra.mxu0 0.0
        %329 = vmatprep.subr.mxu0 0.0
        %330 = vmatpush1.msra.mxu0 0.0
        %331 = vmatprep.subr.mxu0 0.0
        %332 = vmatpush1.msra.mxu0 0.0
        %333 = vmatprep.subr.mxu0 0.0
        %334 = vmatpush1.msra.mxu0 0.0
        %335 = vmatprep.subr.mxu0 0.0
        %336 = vmatpush1.msra.mxu0 0.0
        %337 = vmatprep.subr.mxu0 0.0
        %338 = vmatpush1.msra.mxu0 0.0
        %339 = vmatprep.subr.mxu0 0.0
        %340 = vmatpush1.msra.mxu0 0.0
        %341 = vmatprep.subr.mxu0 0.0
        %342 = vmatpush1.msra.mxu0 0.0
        %343 = vmatprep.mubr.f32.mxu0 0.0
        %344 = vmatmul.mubr.f32.gmra.mrb[0].mxu0 %v215
        %v345 = vpop.f32.mrb[0].mxu0
        %v346 = vadd.f32 0.0, %v345
        %v347 = vpop.f32.mrb[0].mxu0
        %v348 = vadd.f32 0.0, %v347
        %349 = vmatprep.mubr.f32.mxu0 0.0
        %350 = vmatmul.mubr.f32.gmra.mrb[0].mxu0 %v216
        %v351 = vpop.f32.mrb[0].mxu0
        %v352 = vadd.f32 0.0, %v351
        %v353 = vpop.f32.mrb[0].mxu0
        %v354 = vadd.f32 0.0, %v353
        %355 = vmatprep.mubr.f32.mxu0 0.0
        %356 = vmatmul.mubr.f32.gmra.mrb[0].mxu0 %v217
        %v357 = vpop.f32.mrb[0].mxu0
        %v358 = vadd.f32 0.0, %v357
        %v359 = vpop.f32.mrb[0].mxu0
        %v360 = vadd.f32 0.0, %v359
        %361 = vmatprep.mubr.f32.mxu0 0.0
        %362 = vmatmul.mubr.f32.gmra.mrb[0].mxu0 %v218
        %v363 = vpop.f32.mrb[0].mxu0
        %v364 = vadd.f32 0.0, %v363
        %v365 = vpop.f32.mrb[0].mxu0
        %v366 = vadd.f32 0.0, %v365
        %367 = vmatprep.mubr.f32.mxu0 0.0
        %368 = vmatmul.mubr.f32.gmra.mrb[0].mxu0 %v219
        %v369 = vpop.f32.mrb[0].mxu0
        %v370 = vadd.f32 0.0, %v369
        %v371 = vpop.f32.mrb[0].mxu0
        %v372 = vadd.f32 0.0, %v371
        %373 = vmatprep.mubr.f32.mxu0 0.0
        %374 = vmatmul.mubr.f32.gmra.mrb[0].mxu0 %v220
        %v375 = vpop.f32.mrb[0].mxu0
        %v376 = vadd.f32 0.0, %v375
        %v377 = vpop.f32.mrb[0].mxu0
        %v378 = vadd.f32 0.0, %v377
        %379 = vmatprep.mubr.f32.mxu0 0.0
        %380 = vmatmul.mubr.f32.gmra.mrb[0].mxu0 %v221
        %v381 = vpop.f32.mrb[0].mxu0
        %v382 = vadd.f32 0.0, %v381
        %v383 = vpop.f32.mrb[0].mxu0
        %v384 = vadd.f32 0.0, %v383
        %385 = vmatprep.mubr.f32.mxu0 0.0
        %386 = vmatmul.mubr.f32.gmra.mrb[0].mxu0 %v222
        %v387 = vpop.f32.mrb[0].mxu0
        %v388 = vadd.f32 0.0, %v387
        %v389 = vpop.f32.mrb[0].mxu0
        %v390 = vadd.f32 0.0, %v389
        %391 = vmatprep.mubr.f32.mxu0 0.0
        %392 = vmatmul.mubr.f32.gmra.mrb[0].mxu0 %v223
        %v393 = vpop.f32.mrb[0].mxu0
        %v394 = vadd.f32 0.0, %v393
        %v395 = vpop.f32.mrb[0].mxu0
        %v396 = vadd.f32 0.0, %v395
        %397 = vmatprep.mubr.f32.mxu0 0.0
        %398 = vmatmul.mubr.f32.gmra.mrb[0].mxu0 %v224
        %v399 = vpop.f32.mrb[0].mxu0
        %v400 = vadd.f32 0.0, %v399
        %v401 = vpop.f32.mrb[0].mxu0
        %v402 = vadd.f32 0.0, %v401
        %403 = vmatprep.mubr.f32.mxu0 0.0
        %404 = vmatmul.mubr.f32.gmra.mrb[0].mxu0 %v225
        %v405 = vpop.f32.mrb[0].mxu0
        %v406 = vadd.f32 0.0, %v405
        %v407 = vpop.f32.mrb[0].mxu0
        %v408 = vadd.f32 0.0, %v407
        %409 = vmatprep.mubr.f32.mxu0 0.0
        %410 = vmatmul.mubr.f32.gmra.mrb[0].mxu0 %v226
        %v411 = vpop.f32.mrb[0].mxu0
        %v412 = vadd.f32 0.0, %v411
        %v413 = vpop.f32.mrb[0].mxu0
        %v414 = vadd.f32 0.0, %v413
        %415 = vmatprep.mubr.f32.mxu0 0.0
        %416 = vmatmul.mubr.f32.gmra.mrb[0].mxu0 %v227
        %v417 = vpop.f32.mrb[0].mxu0
        %v418 = vadd.f32 0.0, %v417
        %v419 = vpop.f32.mrb[0].mxu0
        %v420 = vadd.f32 0.0, %v419
        %421 = vmatprep.mubr.f32.mxu0 0.0
        %422 = vmatmul.mubr.f32.gmra.mrb[0].mxu0 %v228
        %v423 = vpop.f32.mrb[0].mxu0
        %v424 = vadd.f32 0.0, %v423
        %v425 = vpop.f32.mrb[0].mxu0
        %v426 = vadd.f32 0.0, %v425
        %427 = vmatprep.mubr.f32.mxu0 0.0
        %428 = vmatmul.mubr.f32.gmra.mrb[0].mxu0 %v229
        %v429 = vpop.f32.mrb[0].mxu0
        %v430 = vadd.f32 0.0, %v429
        %v431 = vpop.f32.mrb[0].mxu0
        %v432 = vadd.f32 0.0, %v431
        %433 = vmatprep.mubr.f32.mxu0 0.0
        %434 = vmatmul.mubr.f32.gmra.mrb[0].mxu0 %v230
        %v435 = vpop.f32.mrb[0].mxu0
        %v436 = vadd.f32 0.0, %v435
        %v437 = vpop.f32.mrb[0].mxu0
        %v438 = vadd.f32 0.0, %v437
        %439 = vdwg.mxu0
        %440 = vmatprep.subr.mxu0 0.0
        %441 = vmatpush1.msra.mxu0 %v233
        %442 = vmatprep.subr.mxu0 0.0
        %443 = vmatpush1.msra.mxu0 %v236
        %444 = vmatprep.subr.mxu0 0.0
        %445 = vmatpush1.msra.mxu0 %v239
        %446 = vmatprep.subr.mxu0 0.0
        %447 = vmatpush1.msra.mxu0 %v242
        %448 = vmatprep.subr.mxu0 0.0
        %449 = vmatpush1.msra.mxu0 %v245
        %450 = vmatprep.subr.mxu0 0.0
        %451 = vmatpush1.msra.mxu0 %v248
        %452 = vmatprep.subr.mxu0 0.0
        %453 = vmatpush1.msra.mxu0 %v251
        %454 = vmatprep.subr.mxu0 0.0
        %455 = vmatpush1.msra.mxu0 %v254
        %456 = vmatprep.subr.mxu0 0.0
        %457 = vmatpush1.msra.mxu0 %v257
        %458 = vmatprep.subr.mxu0 0.0
        %459 = vmatpush1.msra.mxu0 %v260
        %460 = vmatprep.subr.mxu0 0.0
        %461 = vmatpush1.msra.mxu0 %v263
        %462 = vmatprep.subr.mxu0 0.0
        %463 = vmatpush1.msra.mxu0 %v266
        %464 = vmatprep.subr.mxu0 0.0
        %465 = vmatpush1.msra.mxu0 %v269
        %466 = vmatprep.subr.mxu0 0.0
        %467 = vmatpush1.msra.mxu0 %v272
        %468 = vmatprep.subr.mxu0 0.0
        %469 = vmatpush1.msra.mxu0 %v275
        %470 = vmatprep.subr.mxu0 0.0
        %471 = vmatpush1.msra.mxu0 %v278
        %472 = vmatprep.subr.mxu0 0.0
        %473 = vmatpush1.msra.mxu0 0.0
        %474 = vmatprep.subr.mxu0 0.0
        %475 = vmatpush1.msra.mxu0 0.0
        %476 = vmatprep.subr.mxu0 0.0
        %477 = vmatpush1.msra.mxu0 0.0
        %478 = vmatprep.subr.mxu0 0.0
        %479 = vmatpush1.msra.mxu0 0.0
        %480 = vmatprep.subr.mxu0 0.0
        %481 = vmatpush1.msra.mxu0 0.0
        %482 = vmatprep.subr.mxu0 0.0
        %483 = vmatpush1.msra.mxu0 0.0
        %484 = vmatprep.subr.mxu0 0.0
        %485 = vmatpush1.msra.mxu0 0.0
        %486 = vmatprep.subr.mxu0 0.0
        %487 = vmatpush1.msra.mxu0 0.0
        %488 = vmatprep.subr.mxu0 0.0
        %489 = vmatpush1.msra.mxu0 0.0
        %490 = vmatprep.subr.mxu0 0.0
        %491 = vmatpush1.msra.mxu0 0.0
        %492 = vmatprep.subr.mxu0 0.0
        %493 = vmatpush1.msra.mxu0 0.0
        %494 = vmatprep.subr.mxu0 0.0
        %495 = vmatpush1.msra.mxu0 0.0
        %496 = vmatprep.subr.mxu0 0.0
        %497 = vmatpush1.msra.mxu0 0.0
        %498 = vmatprep.subr.mxu0 0.0
        %499 = vmatpush1.msra.mxu0 0.0
        %500 = vmatprep.subr.mxu0 0.0
        %501 = vmatpush1.msra.mxu0 0.0
        %502 = vmatprep.subr.mxu0 0.0
        %503 = vmatpush1.msra.mxu0 0.0
        %504 = vmatprep.mubr.f32.mxu0 0.0
        %505 = vmatmul.mubr.f32.gmra.mrb[0].mxu0 %v215
        %v506 = vpop.f32.mrb[0].mxu0
        %v507 = vadd.f32 0.0, %v506
        %v508 = vpop.f32.mrb[0].mxu0
        %509 = vmatprep.mubr.f32.mxu0 0.0
        %510 = vmatmul.mubr.f32.gmra.mrb[0].mxu0 %v216
        %v511 = vpop.f32.mrb[0].mxu0
        %v512 = vadd.f32 0.0, %v511
        %v513 = vpop.f32.mrb[0].mxu0
        %514 = vmatprep.mubr.f32.mxu0 0.0
        %515 = vmatmul.mubr.f32.gmra.mrb[0].mxu0 %v217
        %v516 = vpop.f32.mrb[0].mxu0
        %v517 = vadd.f32 0.0, %v516
        %v518 = vpop.f32.mrb[0].mxu0
        %519 = vmatprep.mubr.f32.mxu0 0.0
        %520 = vmatmul.mubr.f32.gmra.mrb[0].mxu0 %v218
        %v521 = vpop.f32.mrb[0].mxu0
        %v522 = vadd.f32 0.0, %v521
        %v523 = vpop.f32.mrb[0].mxu0
        %524 = vmatprep.mubr.f32.mxu0 0.0
        %525 = vmatmul.mubr.f32.gmra.mrb[0].mxu0 %v219
        %v526 = vpop.f32.mrb[0].mxu0
        %v527 = vadd.f32 0.0, %v526
        %v528 = vpop.f32.mrb[0].mxu0
        %529 = vmatprep.mubr.f32.mxu0 0.0
        %530 = vmatmul.mubr.f32.gmra.mrb[0].mxu0 %v220
        %v531 = vpop.f32.mrb[0].mxu0
        %v532 = vadd.f32 0.0, %v531
        %v533 = vpop.f32.mrb[0].mxu0
        %534 = vmatprep.mubr.f32.mxu0 0.0
        %535 = vmatmul.mubr.f32.gmra.mrb[0].mxu0 %v221
        %v536 = vpop.f32.mrb[0].mxu0
        %v537 = vadd.f32 0.0, %v536
        %v538 = vpop.f32.mrb[0].mxu0
        %539 = vmatprep.mubr.f32.mxu0 0.0
        %540 = vmatmul.mubr.f32.gmra.mrb[0].mxu0 %v222
        %v541 = vpop.f32.mrb[0].mxu0
        %v542 = vadd.f32 0.0, %v541
        %v543 = vpop.f32.mrb[0].mxu0
        %544 = vmatprep.mubr.f32.mxu0 0.0
        %545 = vmatmul.mubr.f32.gmra.mrb[0].mxu0 %v223
        %v546 = vpop.f32.mrb[0].mxu0
        %v547 = vadd.f32 0.0, %v546
        %v548 = vpop.f32.mrb[0].mxu0
        %549 = vmatprep.mubr.f32.mxu0 0.0
        %550 = vmatmul.mubr.f32.gmra.mrb[0].mxu0 %v224
        %v551 = vpop.f32.mrb[0].mxu0
        %v552 = vadd.f32 0.0, %v551
        %v553 = vpop.f32.mrb[0].mxu0
        %554 = vmatprep.mubr.f32.mxu0 0.0
        %555 = vmatmul.mubr.f32.gmra.mrb[0].mxu0 %v225
        %v556 = vpop.f32.mrb[0].mxu0
        %v557 = vadd.f32 0.0, %v556
        %v558 = vpop.f32.mrb[0].mxu0
        %559 = vmatprep.mubr.f32.mxu0 0.0
        %560 = vmatmul.mubr.f32.gmra.mrb[0].mxu0 %v226
        %v561 = vpop.f32.mrb[0].mxu0
        %v562 = vadd.f32 0.0, %v561
        %v563 = vpop.f32.mrb[0].mxu0
        %564 = vmatprep.mubr.f32.mxu0 0.0
        %565 = vmatmul.mubr.f32.gmra.mrb[0].mxu0 %v227
        %v566 = vpop.f32.mrb[0].mxu0
        %v567 = vadd.f32 0.0, %v566
        %v568 = vpop.f32.mrb[0].mxu0
        %569 = vmatprep.mubr.f32.mxu0 0.0
        %570 = vmatmul.mubr.f32.gmra.mrb[0].mxu0 %v228
        %v571 = vpop.f32.mrb[0].mxu0
        %v572 = vadd.f32 0.0, %v571
        %v573 = vpop.f32.mrb[0].mxu0
        %574 = vmatprep.mubr.f32.mxu0 0.0
        %575 = vmatmul.mubr.f32.gmra.mrb[0].mxu0 %v229
        %v576 = vpop.f32.mrb[0].mxu0
        %v577 = vadd.f32 0.0, %v576
        %v578 = vpop.f32.mrb[0].mxu0
        %579 = vmatprep.mubr.f32.mxu0 0.0
        %580 = vmatmul.mubr.f32.gmra.mrb[0].mxu0 %v230
        %v581 = vpop.f32.mrb[0].mxu0
        %v582 = vadd.f32 0.0, %v581
        %v583 = vpop.f32.mrb[0].mxu0
        %584 = vdwg.mxu0
        %585 = vmatprep.subr.mxu0 0.0
        %586 = vmatpush1.xpose.msra.mxu0 %v348
        %587 = vmatprep.subr.mxu0 0.0
        %588 = vmatpush1.xpose.msra.mxu0 %v354
        %589 = vmatprep.subr.mxu0 0.0
        %590 = vmatpush1.xpose.msra.mxu0 %v360
        %591 = vmatprep.subr.mxu0 0.0
        %592 = vmatpush1.xpose.msra.mxu0 %v366
        %593 = vmatprep.subr.mxu0 0.0
        %594 = vmatpush1.xpose.msra.mxu0 %v372
        %595 = vmatprep.subr.mxu0 0.0
        %596 = vmatpush1.xpose.msra.mxu0 %v378
        %597 = vmatprep.subr.mxu0 0.0
        %598 = vmatpush1.xpose.msra.mxu0 %v384
        %599 = vmatprep.subr.mxu0 0.0
        %600 = vmatpush1.xpose.msra.mxu0 %v390
        %601 = vmatprep.subr.mxu0 0.0
        %602 = vmatpush1.xpose.msra.mxu0 %v396
        %603 = vmatprep.subr.mxu0 0.0
        %604 = vmatpush1.xpose.msra.mxu0 %v402
        %605 = vmatprep.subr.mxu0 0.0
        %606 = vmatpush1.xpose.msra.mxu0 %v408
        %607 = vmatprep.subr.mxu0 0.0
        %608 = vmatpush1.xpose.msra.mxu0 %v414
        %609 = vmatprep.subr.mxu0 0.0
        %610 = vmatpush1.xpose.msra.mxu0 %v420
        %611 = vmatprep.subr.mxu0 0.0
        %612 = vmatpush1.xpose.msra.mxu0 %v426
        %613 = vmatprep.subr.mxu0 0.0
        %614 = vmatpush1.xpose.msra.mxu0 %v432
        %615 = vmatprep.subr.mxu0 0.0
        %616 = vmatpush1.xpose.msra.mxu0 %v438
        %617 = vmatprep.subr.mxu0 0.0
        %618 = vmatpush1.xpose.msra.mxu0 0.0
        %619 = vmatprep.subr.mxu0 0.0
        %620 = vmatpush1.xpose.msra.mxu0 0.0
        %621 = vmatprep.subr.mxu0 0.0
        %622 = vmatpush1.xpose.msra.mxu0 0.0
        %623 = vmatprep.subr.mxu0 0.0
        %624 = vmatpush1.xpose.msra.mxu0 0.0
        %625 = vmatprep.subr.mxu0 0.0
        %626 = vmatpush1.xpose.msra.mxu0 0.0
        %627 = vmatprep.subr.mxu0 0.0
        %628 = vmatpush1.xpose.msra.mxu0 0.0
        %629 = vmatprep.subr.mxu0 0.0
        %630 = vmatpush1.xpose.msra.mxu0 0.0
        %631 = vmatprep.subr.mxu0 0.0
        %632 = vmatpush1.xpose.msra.mxu0 0.0
        %633 = vmatprep.subr.mxu0 0.0
        %634 = vmatpush1.xpose.msra.mxu0 0.0
        %635 = vmatprep.subr.mxu0 0.0
        %636 = vmatpush1.xpose.msra.mxu0 0.0
        %637 = vmatprep.subr.mxu0 0.0
        %638 = vmatpush1.xpose.msra.mxu0 0.0
        %639 = vmatprep.subr.mxu0 0.0
        %640 = vmatpush1.xpose.msra.mxu0 0.0
        %641 = vmatprep.subr.mxu0 0.0
        %642 = vmatpush1.xpose.msra.mxu0 0.0
        %643 = vmatprep.subr.mxu0 0.0
        %644 = vmatpush1.xpose.msra.mxu0 0.0
        %645 = vmatprep.subr.mxu0 0.0
        %646 = vmatpush1.xpose.msra.mxu0 0.0
        %647 = vmatprep.subr.mxu0 0.0
        %648 = vmatpush1.xpose.msra.mxu0 0.0
        %649 = vmatprep.mubr.f32.mxu0 0.0
        %650 = vmatmul.mubr.f32.gmra.mrb[0].mxu0 %v346
        %v651 = vpop.f32.mrb[0].mxu0
        %v652 = vadd.f32 0.0, %v651
        %v653 = vpop.f32.mrb[0].mxu0
        %654 = vmatprep.mubr.f32.mxu0 0.0
        %655 = vmatmul.mubr.f32.gmra.mrb[0].mxu0 %v352
        %v656 = vpop.f32.mrb[0].mxu0
        %v657 = vadd.f32 0.0, %v656
        %v658 = vpop.f32.mrb[0].mxu0
        %659 = vmatprep.mubr.f32.mxu0 0.0
        %660 = vmatmul.mubr.f32.gmra.mrb[0].mxu0 %v358
        %v661 = vpop.f32.mrb[0].mxu0
        %v662 = vadd.f32 0.0, %v661
        %v663 = vpop.f32.mrb[0].mxu0
        %664 = vmatprep.mubr.f32.mxu0 0.0
        %665 = vmatmul.mubr.f32.gmra.mrb[0].mxu0 %v364
        %v666 = vpop.f32.mrb[0].mxu0
        %v667 = vadd.f32 0.0, %v666
        %v668 = vpop.f32.mrb[0].mxu0
        %669 = vmatprep.mubr.f32.mxu0 0.0
        %670 = vmatmul.mubr.f32.gmra.mrb[0].mxu0 %v370
        %v671 = vpop.f32.mrb[0].mxu0
        %v672 = vadd.f32 0.0, %v671
        %v673 = vpop.f32.mrb[0].mxu0
        %674 = vmatprep.mubr.f32.mxu0 0.0
        %675 = vmatmul.mubr.f32.gmra.mrb[0].mxu0 %v376
        %v676 = vpop.f32.mrb[0].mxu0
        %v677 = vadd.f32 0.0, %v676
        %v678 = vpop.f32.mrb[0].mxu0
        %679 = vmatprep.mubr.f32.mxu0 0.0
        %680 = vmatmul.mubr.f32.gmra.mrb[0].mxu0 %v382
        %v681 = vpop.f32.mrb[0].mxu0
        %v682 = vadd.f32 0.0, %v681
        %v683 = vpop.f32.mrb[0].mxu0
        %684 = vmatprep.mubr.f32.mxu0 0.0
        %685 = vmatmul.mubr.f32.gmra.mrb[0].mxu0 %v388
        %v686 = vpop.f32.mrb[0].mxu0
        %v687 = vadd.f32 0.0, %v686
        %v688 = vpop.f32.mrb[0].mxu0
        %689 = vmatprep.mubr.f32.mxu0 0.0
        %690 = vmatmul.mubr.f32.gmra.mrb[0].mxu0 %v394
        %v691 = vpop.f32.mrb[0].mxu0
        %v692 = vadd.f32 0.0, %v691
        %v693 = vpop.f32.mrb[0].mxu0
        %694 = vmatprep.mubr.f32.mxu0 0.0
        %695 = vmatmul.mubr.f32.gmra.mrb[0].mxu0 %v400
        %v696 = vpop.f32.mrb[0].mxu0
        %v697 = vadd.f32 0.0, %v696
        %v698 = vpop.f32.mrb[0].mxu0
        %699 = vmatprep.mubr.f32.mxu0 0.0
        %700 = vmatmul.mubr.f32.gmra.mrb[0].mxu0 %v406
        %v701 = vpop.f32.mrb[0].mxu0
        %v702 = vadd.f32 0.0, %v701
        %v703 = vpop.f32.mrb[0].mxu0
        %704 = vmatprep.mubr.f32.mxu0 0.0
        %705 = vmatmul.mubr.f32.gmra.mrb[0].mxu0 %v412
        %v706 = vpop.f32.mrb[0].mxu0
        %v707 = vadd.f32 0.0, %v706
        %v708 = vpop.f32.mrb[0].mxu0
        %709 = vmatprep.mubr.f32.mxu0 0.0
        %710 = vmatmul.mubr.f32.gmra.mrb[0].mxu0 %v418
        %v711 = vpop.f32.mrb[0].mxu0
        %v712 = vadd.f32 0.0, %v711
        %v713 = vpop.f32.mrb[0].mxu0
        %714 = vmatprep.mubr.f32.mxu0 0.0
        %715 = vmatmul.mubr.f32.gmra.mrb[0].mxu0 %v424
        %v716 = vpop.f32.mrb[0].mxu0
        %v717 = vadd.f32 0.0, %v716
        %v718 = vpop.f32.mrb[0].mxu0
        %719 = vmatprep.mubr.f32.mxu0 0.0
        %720 = vmatmul.mubr.f32.gmra.mrb[0].mxu0 %v430
        %v721 = vpop.f32.mrb[0].mxu0
        %v722 = vadd.f32 0.0, %v721
        %v723 = vpop.f32.mrb[0].mxu0
        %724 = vmatprep.mubr.f32.mxu0 0.0
        %725 = vmatmul.mubr.f32.gmra.mrb[0].mxu0 %v436
        %v726 = vpop.f32.mrb[0].mxu0
        %v727 = vadd.f32 0.0, %v726
        %v728 = vpop.f32.mrb[0].mxu0
        %729 = vdwg.mxu0
        %730 = vmax.xlane.f32.xlu0 %v652
        %v731 = vpop.xlane.xlu0 %730
        %732 = vmax.xlane.f32.xlu0 %v657
        %v733 = vpop.xlane.xlu0 %732
        %734 = vmax.xlane.f32.xlu0 %v662
        %v735 = vpop.xlane.xlu0 %734
        %736 = vmax.xlane.f32.xlu0 %v667
        %v737 = vpop.xlane.xlu0 %736
        %738 = vmax.xlane.f32.xlu0 %v672
        %v739 = vpop.xlane.xlu0 %738
        %740 = vmax.xlane.f32.xlu0 %v677
        %v741 = vpop.xlane.xlu0 %740
        %742 = vmax.xlane.f32.xlu0 %v682
        %v743 = vpop.xlane.xlu0 %742
        %744 = vmax.xlane.f32.xlu0 %v687
        %v745 = vpop.xlane.xlu0 %744
        %746 = vmax.xlane.f32.xlu0 %v692
        %v747 = vpop.xlane.xlu0 %746
        %748 = vmax.xlane.f32.xlu0 %v697
        %v749 = vpop.xlane.xlu0 %748
        %750 = vmax.xlane.f32.xlu0 %v702
        %v751 = vpop.xlane.xlu0 %750
        %752 = vmax.xlane.f32.xlu0 %v707
        %v753 = vpop.xlane.xlu0 %752
        %754 = vmax.xlane.f32.xlu0 %v712
        %v755 = vpop.xlane.xlu0 %754
        %756 = vmax.xlane.f32.xlu0 %v717
        %v757 = vpop.xlane.xlu0 %756
        %758 = vmax.xlane.f32.xlu0 %v722
        %v759 = vpop.xlane.xlu0 %758
        %760 = vmax.xlane.f32.xlu0 %v727
        %v761 = vpop.xlane.xlu0 %760
        %v762 = vsub.f32 %v652, %v731
        %v763 = vsub.f32 %v657, %v733
        %v764 = vsub.f32 %v662, %v735
        %v765 = vsub.f32 %v667, %v737
        %v766 = vsub.f32 %v672, %v739
        %v767 = vsub.f32 %v677, %v741
        %v768 = vsub.f32 %v682, %v743
        %v769 = vsub.f32 %v687, %v745
        %v770 = vsub.f32 %v692, %v747
        %v771 = vsub.f32 %v697, %v749
        %v772 = vsub.f32 %v702, %v751
        %v773 = vsub.f32 %v707, %v753
        %v774 = vsub.f32 %v712, %v755
        %v775 = vsub.f32 %v717, %v757
        %v776 = vsub.f32 %v722, %v759
        %v777 = vsub.f32 %v727, %v761
        %v778 = vmul.f32 %v762, 1.442695
        %v779 = vpow.pop %v778
        %v780 = vmul.f32 %v763, 1.442695
        %v781 = vpow.pop %v780
        %v782 = vmul.f32 %v764, 1.442695
        %v783 = vpow.pop %v782
        %v784 = vmul.f32 %v765, 1.442695
        %v785 = vpow.pop %v784
        %v786 = vmul.f32 %v766, 1.442695
        %v787 = vpow.pop %v786
        %v788 = vmul.f32 %v767, 1.442695
        %v789 = vpow.pop %v788
        %v790 = vmul.f32 %v768, 1.442695
        %v791 = vpow.pop %v790
        %v792 = vmul.f32 %v769, 1.442695
        %v793 = vpow.pop %v792
        %v794 = vmul.f32 %v770, 1.442695
        %v795 = vpow.pop %v794
        %v796 = vmul.f32 %v771, 1.442695
        %v797 = vpow.pop %v796
        %v798 = vmul.f32 %v772, 1.442695
        %v799 = vpow.pop %v798
        %v800 = vmul.f32 %v773, 1.442695
        %v801 = vpow.pop %v800
        %v802 = vmul.f32 %v774, 1.442695
        %v803 = vpow.pop %v802
        %v804 = vmul.f32 %v775, 1.442695
        %v805 = vpow.pop %v804
        %v806 = vmul.f32 %v776, 1.442695
        %v807 = vpow.pop %v806
        %v808 = vmul.f32 %v777, 1.442695
        %v809 = vpow.pop %v808
        %810 = vadd.xlane.f32.xlu0 %v779
        %v811 = vpop.xlane.xlu0 %810
        %812 = vadd.xlane.f32.xlu0 %v781
        %v813 = vpop.xlane.xlu0 %812
        %814 = vadd.xlane.f32.xlu0 %v783
        %v815 = vpop.xlane.xlu0 %814
        %816 = vadd.xlane.f32.xlu0 %v785
        %v817 = vpop.xlane.xlu0 %816
        %818 = vadd.xlane.f32.xlu0 %v787
        %v819 = vpop.xlane.xlu0 %818
        %820 = vadd.xlane.f32.xlu0 %v789
        %v821 = vpop.xlane.xlu0 %820
        %822 = vadd.xlane.f32.xlu0 %v791
        %v823 = vpop.xlane.xlu0 %822
        %824 = vadd.xlane.f32.xlu0 %v793
        %v825 = vpop.xlane.xlu0 %824
        %826 = vadd.xlane.f32.xlu0 %v795
        %v827 = vpop.xlane.xlu0 %826
        %828 = vadd.xlane.f32.xlu0 %v797
        %v829 = vpop.xlane.xlu0 %828
        %830 = vadd.xlane.f32.xlu0 %v799
        %v831 = vpop.xlane.xlu0 %830
        %832 = vadd.xlane.f32.xlu0 %v801
        %v833 = vpop.xlane.xlu0 %832
        %834 = vadd.xlane.f32.xlu0 %v803
        %v835 = vpop.xlane.xlu0 %834
        %836 = vadd.xlane.f32.xlu0 %v805
        %v837 = vpop.xlane.xlu0 %836
        %838 = vadd.xlane.f32.xlu0 %v807
        %v839 = vpop.xlane.xlu0 %838
        %840 = vadd.xlane.f32.xlu0 %v809
        %v841 = vpop.xlane.xlu0 %840
        %v842 = vrcp.pop %v811
        %v843 = vrcp.pop %v813
        %v844 = vrcp.pop %v815
        %v845 = vrcp.pop %v817
        %v846 = vrcp.pop %v819
        %v847 = vrcp.pop %v821
        %v848 = vrcp.pop %v823
        %v849 = vrcp.pop %v825
        %v850 = vrcp.pop %v827
        %v851 = vrcp.pop %v829
        %v852 = vrcp.pop %v831
        %v853 = vrcp.pop %v833
        %v854 = vrcp.pop %v835
        %v855 = vrcp.pop %v837
        %v856 = vrcp.pop %v839
        %v857 = vrcp.pop %v841
        %v858 = vmul.f32 %v779, %v842
        %v859 = vmul.f32 %v781, %v843
        %v860 = vmul.f32 %v783, %v844
        %v861 = vmul.f32 %v785, %v845
        %v862 = vmul.f32 %v787, %v846
        %v863 = vmul.f32 %v789, %v847
        %v864 = vmul.f32 %v791, %v848
        %v865 = vmul.f32 %v793, %v849
        %v866 = vmul.f32 %v795, %v850
        %v867 = vmul.f32 %v797, %v851
        %v868 = vmul.f32 %v799, %v852
        %v869 = vmul.f32 %v801, %v853
        %v870 = vmul.f32 %v803, %v854
        %v871 = vmul.f32 %v805, %v855
        %v872 = vmul.f32 %v807, %v856
        %v873 = vmul.f32 %v809, %v857
        %874 = vmatprep.subr.mxu0 0.0
        %875 = vmatpush1.msra.mxu0 %v507
        %876 = vmatprep.subr.mxu0 0.0
        %877 = vmatpush1.msra.mxu0 %v512
        %878 = vmatprep.subr.mxu0 0.0
        %879 = vmatpush1.msra.mxu0 %v517
        %880 = vmatprep.subr.mxu0 0.0
        %881 = vmatpush1.msra.mxu0 %v522
        %882 = vmatprep.subr.mxu0 0.0
        %883 = vmatpush1.msra.mxu0 %v527
        %884 = vmatprep.subr.mxu0 0.0
        %885 = vmatpush1.msra.mxu0 %v532
        %886 = vmatprep.subr.mxu0 0.0
        %887 = vmatpush1.msra.mxu0 %v537
        %888 = vmatprep.subr.mxu0 0.0
        %889 = vmatpush1.msra.mxu0 %v542
        %890 = vmatprep.subr.mxu0 0.0
        %891 = vmatpush1.msra.mxu0 %v547
        %892 = vmatprep.subr.mxu0 0.0
        %893 = vmatpush1.msra.mxu0 %v552
        %894 = vmatprep.subr.mxu0 0.0
        %895 = vmatpush1.msra.mxu0 %v557
        %896 = vmatprep.subr.mxu0 0.0
        %897 = vmatpush1.msra.mxu0 %v562
        %898 = vmatprep.subr.mxu0 0.0
        %899 = vmatpush1.msra.mxu0 %v567
        %900 = vmatprep.subr.mxu0 0.0
        %901 = vmatpush1.msra.mxu0 %v572
        %902 = vmatprep.subr.mxu0 0.0
        %903 = vmatpush1.msra.mxu0 %v577
        %904 = vmatprep.subr.mxu0 0.0
        %905 = vmatpush1.msra.mxu0 %v582
        %906 = vmatprep.subr.mxu0 0.0
        %907 = vmatpush1.msra.mxu0 0.0
        %908 = vmatprep.subr.mxu0 0.0
        %909 = vmatpush1.msra.mxu0 0.0
        %910 = vmatprep.subr.mxu0 0.0
        %911 = vmatpush1.msra.mxu0 0.0
        %912 = vmatprep.subr.mxu0 0.0
        %913 = vmatpush1.msra.mxu0 0.0
        %914 = vmatprep.subr.mxu0 0.0
        %915 = vmatpush1.msra.mxu0 0.0
        %916 = vmatprep.subr.mxu0 0.0
        %917 = vmatpush1.msra.mxu0 0.0
        %918 = vmatprep.subr.mxu0 0.0
        %919 = vmatpush1.msra.mxu0 0.0
        %920 = vmatprep.subr.mxu0 0.0
        %921 = vmatpush1.msra.mxu0 0.0
        %922 = vmatprep.subr.mxu0 0.0
        %923 = vmatpush1.msra.mxu0 0.0
        %924 = vmatprep.subr.mxu0 0.0
        %925 = vmatpush1.msra.mxu0 0.0
        %926 = vmatprep.subr.mxu0 0.0
        %927 = vmatpush1.msra.mxu0 0.0
        %928 = vmatprep.subr.mxu0 0.0
        %929 = vmatpush1.msra.mxu0 0.0
        %930 = vmatprep.subr.mxu0 0.0
        %931 = vmatpush1.msra.mxu0 0.0
        %932 = vmatprep.subr.mxu0 0.0
        %933 = vmatpush1.msra.mxu0 0.0
        %934 = vmatprep.subr.mxu0 0.0
        %935 = vmatpush1.msra.mxu0 0.0
        %936 = vmatprep.subr.mxu0 0.0
        %937 = vmatpush1.msra.mxu0 0.0
        %938 = vmatprep.mubr.f32.mxu0 0.0
        %939 = vmatmul.mubr.f32.gmra.mrb[0].mxu0 %v858
        %v940 = vpop.f32.mrb[0].mxu0
        %v941 = vadd.f32 0.0, %v940
        %v942 = vpop.f32.mrb[0].mxu0
        %943 = vmatprep.mubr.f32.mxu0 0.0
        %944 = vmatmul.mubr.f32.gmra.mrb[0].mxu0 %v859
        %v945 = vpop.f32.mrb[0].mxu0
        %v946 = vadd.f32 0.0, %v945
        %v947 = vpop.f32.mrb[0].mxu0
        %948 = vmatprep.mubr.f32.mxu0 0.0
        %949 = vmatmul.mubr.f32.gmra.mrb[0].mxu0 %v860
        %v950 = vpop.f32.mrb[0].mxu0
        %v951 = vadd.f32 0.0, %v950
        %v952 = vpop.f32.mrb[0].mxu0
        %953 = vmatprep.mubr.f32.mxu0 0.0
        %954 = vmatmul.mubr.f32.gmra.mrb[0].mxu0 %v861
        %v955 = vpop.f32.mrb[0].mxu0
        %v956 = vadd.f32 0.0, %v955
        %v957 = vpop.f32.mrb[0].mxu0
        %958 = vmatprep.mubr.f32.mxu0 0.0
        %959 = vmatmul.mubr.f32.gmra.mrb[0].mxu0 %v862
        %v960 = vpop.f32.mrb[0].mxu0
        %v961 = vadd.f32 0.0, %v960
        %v962 = vpop.f32.mrb[0].mxu0
        %963 = vmatprep.mubr.f32.mxu0 0.0
        %964 = vmatmul.mubr.f32.gmra.mrb[0].mxu0 %v863
        %v965 = vpop.f32.mrb[0].mxu0
        %v966 = vadd.f32 0.0, %v965
        %v967 = vpop.f32.mrb[0].mxu0
        %968 = vmatprep.mubr.f32.mxu0 0.0
        %969 = vmatmul.mubr.f32.gmra.mrb[0].mxu0 %v864
        %v970 = vpop.f32.mrb[0].mxu0
        %v971 = vadd.f32 0.0, %v970
        %v972 = vpop.f32.mrb[0].mxu0
        %973 = vmatprep.mubr.f32.mxu0 0.0
        %974 = vmatmul.mubr.f32.gmra.mrb[0].mxu0 %v865
        %v975 = vpop.f32.mrb[0].mxu0
        %v976 = vadd.f32 0.0, %v975
        %v977 = vpop.f32.mrb[0].mxu0
        %978 = vmatprep.mubr.f32.mxu0 0.0
        %979 = vmatmul.mubr.f32.gmra.mrb[0].mxu0 %v866
        %v980 = vpop.f32.mrb[0].mxu0
        %v981 = vadd.f32 0.0, %v980
        %v982 = vpop.f32.mrb[0].mxu0
        %983 = vmatprep.mubr.f32.mxu0 0.0
        %984 = vmatmul.mubr.f32.gmra.mrb[0].mxu0 %v867
        %v985 = vpop.f32.mrb[0].mxu0
        %v986 = vadd.f32 0.0, %v985
        %v987 = vpop.f32.mrb[0].mxu0
        %988 = vmatprep.mubr.f32.mxu0 0.0
        %989 = vmatmul.mubr.f32.gmra.mrb[0].mxu0 %v868
        %v990 = vpop.f32.mrb[0].mxu0
        %v991 = vadd.f32 0.0, %v990
        %v992 = vpop.f32.mrb[0].mxu0
        %993 = vmatprep.mubr.f32.mxu0 0.0
        %994 = vmatmul.mubr.f32.gmra.mrb[0].mxu0 %v869
        %v995 = vpop.f32.mrb[0].mxu0
        %v996 = vadd.f32 0.0, %v995
        %v997 = vpop.f32.mrb[0].mxu0
        %998 = vmatprep.mubr.f32.mxu0 0.0
        %999 = vmatmul.mubr.f32.gmra.mrb[0].mxu0 %v870
        %v1000 = vpop.f32.mrb[0].mxu0
        %v1001 = vadd.f32 0.0, %v1000
        %v1002 = vpop.f32.mrb[0].mxu0
        %1003 = vmatprep.mubr.f32.mxu0 0.0
        %1004 = vmatmul.mubr.f32.gmra.mrb[0].mxu0 %v871
        %v1005 = vpop.f32.mrb[0].mxu0
        %v1006 = vadd.f32 0.0, %v1005
        %v1007 = vpop.f32.mrb[0].mxu0
        %1008 = vmatprep.mubr.f32.mxu0 0.0
        %1009 = vmatmul.mubr.f32.gmra.mrb[0].mxu0 %v872
        %v1010 = vpop.f32.mrb[0].mxu0
        %v1011 = vadd.f32 0.0, %v1010
        %v1012 = vpop.f32.mrb[0].mxu0
        %1013 = vmatprep.mubr.f32.mxu0 0.0
        %1014 = vmatmul.mubr.f32.gmra.mrb[0].mxu0 %v873
        %v1015 = vpop.f32.mrb[0].mxu0
        %v1016 = vadd.f32 0.0, %v1015
        %v1017 = vpop.f32.mrb[0].mxu0
        %1018 = vdwg.mxu0
        %1019 = vst [vmem:[%s207] sm:$0xff] %v941
        %1020 = vst [vmem:[%s207 + $0x8] sm:$0xff] %v946
        %1021 = vst [vmem:[%s207 + $0x10] sm:$0xff] %v951
        %1022 = vst [vmem:[%s207 + $0x18] sm:$0xff] %v956
        %1023 = vst [vmem:[%s207 + $0x20] sm:$0xff] %v961
        %1024 = vst [vmem:[%s207 + $0x28] sm:$0xff] %v966
        %1025 = vst [vmem:[%s207 + $0x30] sm:$0xff] %v971
        %1026 = vst [vmem:[%s207 + $0x38] sm:$0xff] %v976
        %1027 = vst [vmem:[%s207 + $0x40] sm:$0xff] %v981
        %1028 = vst [vmem:[%s207 + $0x48] sm:$0xff] %v986
        %1029 = vst [vmem:[%s207 + $0x50] sm:$0xff] %v991
        %1030 = vst [vmem:[%s207 + $0x58] sm:$0xff] %v996
        %1031 = vst [vmem:[%s207 + $0x60] sm:$0xff] %v1001
        %1032 = vst [vmem:[%s207 + $0x68] sm:$0xff] %v1006
        %1033 = vst [vmem:[%s207 + $0x70] sm:$0xff] %v1011
        %1034 = vst [vmem:[%s207 + $0x78] sm:$0xff] %v1016
        %1035 = vst [vmem:[%s214] sm:$0xff] %v858
        %1036 = vst [vmem:[%s214 + $0x8] sm:$0xff] %v859
        %1037 = vst [vmem:[%s214 + $0x10] sm:$0xff] %v860
        %1038 = vst [vmem:[%s214 + $0x18] sm:$0xff] %v861
        %1039 = vst [vmem:[%s214 + $0x20] sm:$0xff] %v862
        %1040 = vst [vmem:[%s214 + $0x28] sm:$0xff] %v863
        %1041 = vst [vmem:[%s214 + $0x30] sm:$0xff] %v864
        %1042 = vst [vmem:[%s214 + $0x38] sm:$0xff] %v865
        %1043 = vst [vmem:[%s214 + $0x40] sm:$0xff] %v866
        %1044 = vst [vmem:[%s214 + $0x48] sm:$0xff] %v867
        %1045 = vst [vmem:[%s214 + $0x50] sm:$0xff] %v868
        %1046 = vst [vmem:[%s214 + $0x58] sm:$0xff] %v869
        %1047 = vst [vmem:[%s214 + $0x60] sm:$0xff] %v870
        %1048 = vst [vmem:[%s214 + $0x68] sm:$0xff] %v871
        %1049 = vst [vmem:[%s214 + $0x70] sm:$0xff] %v872
        %1050 = vst [vmem:[%s214 + $0x78] sm:$0xff] %v873
        %s1051 = sand.u32 %s80, 1
        %s1052 = scalar_lea.sflag [#allocation4], %s1051
        %s1053 = sand.u32 %s80, 1
        %s1054 = smul.addr %s1053, 128
        %s1055 = scalar_lea.vmem [#allocation7], %s1054
        %s1056 = sand.u32 %s106, 1
        %s1057 = scalar_lea.sflag [#allocation9], %s1056
        %s1058 = sand.u32 %s106, 1
        %s1059 = smul.addr %s1058, 128
        %s1060 = scalar_lea.vmem [#allocation8], %s1059
        // Predicated region
        $region37: #{tpu_custom_call.1} parent=27 // pred_check
          %p1061 = pneg %p90
        $region38: #{tpu_custom_call.1} parent=27 // pred_check_branch
          %1063 = sbr.rel (%p1061) target = $region40
        $region39: #{tpu_custom_call.1} parent=27 // pred_region
          %s1065 = ssub.s32 2048, 2048
          %1066 = vsyncadd %s1052, %s1065
          %s1067 = smul.addr %s25, 16
          %s1068 = smul.addr %s1067, 128
          %s1069 = scalar_lea.hbm %s2, %s1068
          %s1070 = sshll.u32 %s1055, 4
          %s1071 = int_to_ptr.vmem [resolvable:$true] %s1070
          %1076 = dma.vmem_to_hbm [thread:$0]  %s1071, 2048, %s1069, %s1052, 128, 128, 8
        $region40: #{tpu_custom_call.1} parent=27 // pred_fallthru
          _
        // Predicated region
        $region41: #{tpu_custom_call.1} parent=27 // pred_check
          %p1077 = pneg %p116
        $region42: #{tpu_custom_call.1} parent=27 // pred_check_branch
          %1079 = sbr.rel (%p1077) target = $region44
        $region43: #{tpu_custom_call.1} parent=27 // pred_region
          %s1081 = ssub.s32 2048, 2048
          %1082 = vsyncadd %s1057, %s1081
          %s1083 = smul.addr %s25, 16
          %s1084 = smul.addr %s1083, 128
          %s1085 = scalar_lea.hbm %s3, %s1084
          %s1086 = sshll.u32 %s1060, 4
          %s1087 = int_to_ptr.vmem [resolvable:$true] %s1086
          %1092 = dma.vmem_to_hbm [thread:$0]  %s1087, 2048, %s1085, %s1057, 128, 128, 8
        $region44: #{tpu_custom_call.1} parent=27 // pred_fallthru
          _
      $region28: #{tpu_custom_call.1} parent=5 // pred_fallthru
        _
      %p1093 = scmp.le.s32.totalorder 2, %s20
      // Predicated region
      $region45: #{tpu_custom_call.1} parent=5 // pred_check
        %p1094 = pneg %p1093
      $region46: #{tpu_custom_call.1} parent=5 // pred_check_branch
        %1096 = sbr.rel (%p1094) target = $region48
      $region47: #{tpu_custom_call.1} parent=5 // pred_region
        %s1097 = ssub.s32 %s20, 2
        // Predicated region
        $region49: #{tpu_custom_call.1} parent=47 // pred_check
          %p1098 = pneg %p96
        $region50: #{tpu_custom_call.1} parent=47 // pred_check_branch
          %1100 = sbr.rel (%p1098) target = $region52
        $region51: #{tpu_custom_call.1} parent=47 // pred_region
          %s1101 = sand.u32 %s81, 1
          %s1102 = scalar_lea.sflag [#allocation4], %s1101
          %s1103 = sand.u32 %s81, 1
          %s1104 = smul.addr %s1103, 128
          %s1105 = scalar_lea.vmem [#allocation7], %s1104
          %1106 = dma.done %s1102, 2048
        $region52: #{tpu_custom_call.1} parent=47 // pred_fallthru
          _
        // Predicated region
        $region53: #{tpu_custom_call.1} parent=47 // pred_check
          %p1107 = pneg %p122
        $region54: #{tpu_custom_call.1} parent=47 // pred_check_branch
          %1109 = sbr.rel (%p1107) target = $region56
        $region55: #{tpu_custom_call.1} parent=47 // pred_region
          %s1110 = sand.u32 %s107, 1
          %s1111 = scalar_lea.sflag [#allocation9], %s1110
          %s1112 = sand.u32 %s107, 1
          %s1113 = smul.addr %s1112, 128
          %s1114 = scalar_lea.vmem [#allocation8], %s1113
          %1115 = dma.done %s1111, 2048
        $region56: #{tpu_custom_call.1} parent=47 // pred_fallthru
          _
      $region48: #{tpu_custom_call.1} parent=5 // pred_fallthru
        _
    $region6: #{tpu_custom_call.1} parent=1 // loop_footer
      %s24 = sadd.s32 1, %s20
    $region7: #{tpu_custom_call.1} parent=1 // loop_footer_branch
      %19 = sbr.rel target = $region3
    $region8: #{tpu_custom_call.1} parent=1 // loop_exit
      _
    %1116 = vsyncpa [#allocation3], 1
    %s1117 = scalar_lea.sflag [#allocation3], 1
    %1118 = vsyncpa %s1117, 1
    %1119 = vsyncpa [#allocation6], 1
    %1120 = vsyncpa [#allocation4], 1
    %s1121 = scalar_lea.sflag [#allocation4], 1
    %1122 = vsyncpa %s1121, 1
    %1123 = vsyncpa [#allocation9], 1
    %s1124 = scalar_lea.sflag [#allocation9], 1
    %1125 = vsyncpa %s1124, 1

// kernel: tpu_custom_call.1
$region0: #{tpu_custom_call.1}
  #allocation0 [shape = 'u32[]', space=smem, size = 0x4, offset = 0x4, fixed_abs, tag = 'smem constant byte address 0x4 - core index']
  #allocation1 [shape = 'u32[144,128]{1,0:T(1,128)}', space=vmem, size = 0x12000, scoped, tag = 'internal scratch']
  %s0 = inlined_call_operand.hbm [shape: f32[4,128,128], index: 0, kind: input, shape index: {}]
  %s1 = inlined_call_operand.hbm [shape: f32[128,384], index: 1, kind: input, shape index: {}]
  %s2 = inlined_call_operand.hbm [shape: f32[4,128,128], index: 2, kind: output, shape index: {0}]
  %s3 = inlined_call_operand.hbm [shape: f32[4,128,128], index: 3, kind: output, shape index: {1}]
  %4 = xla_tuple %s2, %s3
  %s5 = sld [smem:[#allocation0]]
  $region57: #{tpu_custom_call.1} parent=0
    _
  %s7 = ssub.s32 1, %s5
  %s8 = scalar_select 0, %s7, %s5
  $region1: #{tpu_custom_call.1} parent=0
    #allocation2 [shape = 'u8[131072]{0}', space=vmem, size = 0x20000, scoped, tag = 'input window, operand 0']
    #allocation3 [shape = 's32[2]{0}', space=sflag, size = 0x8, scoped, tag = 'scoped memory for tpu_custom_call.1']
    #allocation4 [shape = 's32[2]{0}', space=sflag, size = 0x8, scoped, tag = 'scoped memory for tpu_custom_call.1']
    #allocation5 [shape = 'u8[196608]{0}', space=vmem, size = 0x30000, scoped, tag = 'input window, operand 1, single buffered']
    #allocation6 [shape = 's32[1]{0}', space=sflag, size = 0x4, scoped, tag = 'scoped memory for tpu_custom_call.1']
    #allocation7 [shape = 'u8[131072]{0}', space=vmem, size = 0x20000, scoped, tag = 'output window, operand 0']
    #allocation8 [shape = 'u8[131072]{0}', space=vmem, size = 0x20000, scoped, tag = 'output window, operand 1']
    #allocation9 [shape = 's32[2]{0}', space=sflag, size = 0x8, scoped, tag = 'scoped memory for tpu_custom_call.1']
    %9 = vsyncpa [#allocation3], 0
    %s10 = scalar_lea.sflag [#allocation3], 1
    %11 = vsyncpa %s10, 0
    %12 = vsyncpa [#allocation6], 0
    %13 = vsyncpa [#allocation4], 0
    %s14 = scalar_lea.sflag [#allocation4], 1
    %15 = vsyncpa %s14, 0
    %16 = vsyncpa [#allocation9], 0
    %s17 = scalar_lea.sflag [#allocation9], 1
    %18 = vsyncpa %s17, 0
    loop: start=0, step=1, limit=6
    $region2: #{tpu_custom_call.1} parent=1 // loop_pre_header
      _
    $region3: #{tpu_custom_call.1} parent=1 // loop_header
      %s20 = sphi 0, %s24
      %p21 = scmp.ge.s32.totalorder %s20, 6
      %s30 = sphi 0, %s32
      %s33 = sphi 0, %s30
      %s34 = sphi 0, %s33
      %s50 = sphi 0, %s34
      %s54 = sphi 0, %s54
      %s56 = sphi 0, %s54
      %s57 = sphi 0, %s56
      %s71 = sphi 0, %s57
      %s77 = sphi 0, %s79
      %s80 = sphi 0, %s77
      %s81 = sphi 0, %s80
      %s97 = sphi 0, %s81
      %s103 = sphi 0, %s105
      %s106 = sphi 0, %s103
      %s107 = sphi 0, %s106
      %s123 = sphi 0, %s107
    $region4: #{tpu_custom_call.1} parent=1 // loop_header_branch
      %23 = sbr.rel (%p21) target = $region8
    $region5: #{tpu_custom_call.1} parent=1 // loop_body
      %s25 = ssub.s32 %s20, 1
      %s26 = ssub.s32 %s20, 2
      %s27 = sadd.s32 %s20, 1
      %s28 = ssub.s32 %s20, %s27
      %p29 = scmp.eq.s32.totalorder %s28, 0
      %s31 = sadd.s32 %s30, 1
      %s32 = scalar_select %p29, %s30, %s31
      %p35 = pneg %p29
      %p36 = scmp.eq.s32.totalorder %s20, 3
      %p37 = por %p35, %p36
      %p38 = scmp.ne.s32.totalorder %s30, %s33
      %p39 = scmp.eq.s32.totalorder %s20, 0
      %p40 = por %p38, %p39
      %p41 = scmp.ne.s32.totalorder %s30, %s33
      %p42 = scmp.eq.s32.totalorder %s25, 3
      %p43 = por %p41, %p42
      %p44 = scmp.ne.s32.totalorder %s33, %s34
      %p45 = scmp.eq.s32.totalorder %s25, 0
      %p46 = por %p44, %p45
      %p47 = scmp.ne.s32.totalorder %s33, %s34
      %p48 = scmp.eq.s32.totalorder %s26, 3
      %p49 = por %p47, %p48
      %p51 = scmp.ne.s32.totalorder %s34, %s50
      %p52 = scmp.eq.s32.totalorder %s26, 0
      %p53 = por %p51, %p52
      %s55 = sadd.s32 %s54, 1
      %p58 = scmp.eq.s32.totalorder %s20, 3
      %p59 = scmp.ne.s32.totalorder %s54, %s56
      %p60 = scmp.eq.s32.totalorder %s20, 0
      %p61 = por %p59, %p60
      %p62 = scmp.ne.s32.totalorder %s54, %s56
      %p63 = scmp.eq.s32.totalorder %s25, 3
      %p64 = por %p62, %p63
      %p65 = scmp.ne.s32.totalorder %s56, %s57
      %p66 = scmp.eq.s32.totalorder %s25, 0
      %p67 = por %p65, %p66
      %p68 = scmp.ne.s32.totalorder %s56, %s57
      %p69 = scmp.eq.s32.totalorder %s26, 3
      %p70 = por %p68, %p69
      %p72 = scmp.ne.s32.totalorder %s57, %s71
      %p73 = scmp.eq.s32.totalorder %s26, 0
      %p74 = por %p72, %p73
      %s75 = ssub.s32 %s20, %s27
      %p76 = scmp.eq.s32.totalorder %s75, 0
      %s78 = sadd.s32 %s77, 1
      %s79 = scalar_select %p76, %s77, %s78
      %p82 = pneg %p76
      %p83 = scmp.eq.s32.totalorder %s20, 3
      %p84 = por %p82, %p83
      %p85 = scmp.ne.s32.totalorder %s77, %s80
      %p86 = scmp.eq.s32.totalorder %s20, 0
      %p87 = por %p85, %p86
      %p88 = scmp.ne.s32.totalorder %s77, %s80
      %p89 = scmp.eq.s32.totalorder %s25, 3
      %p90 = por %p88, %p89
      %p91 = scmp.ne.s32.totalorder %s80, %s81
      %p92 = scmp.eq.s32.totalorder %s25, 0
      %p93 = por %p91, %p92
      %p94 = scmp.ne.s32.totalorder %s80, %s81
      %p95 = scmp.eq.s32.totalorder %s26, 3
      %p96 = por %p94, %p95
      %p98 = scmp.ne.s32.totalorder %s81, %s97
      %p99 = scmp.eq.s32.totalorder %s26, 0
      %p100 = por %p98, %p99
      %s101 = ssub.s32 %s20, %s27
      %p102 = scmp.eq.s32.totalorder %s101, 0
      %s104 = sadd.s32 %s103, 1
      %s105 = scalar_select %p102, %s103, %s104
      %p108 = pneg %p102
      %p109 = scmp.eq.s32.totalorder %s20, 3
      %p110 = por %p108, %p109
      %p111 = scmp.ne.s32.totalorder %s103, %s106
      %p112 = scmp.eq.s32.totalorder %s20, 0
      %p113 = por %p111, %p112
      %p114 = scmp.ne.s32.totalorder %s103, %s106
      %p115 = scmp.eq.s32.totalorder %s25, 3
      %p116 = por %p114, %p115
      %p117 = scmp.ne.s32.totalorder %s106, %s107
      %p118 = scmp.eq.s32.totalorder %s25, 0
      %p119 = por %p117, %p118
      %p120 = scmp.ne.s32.totalorder %s106, %s107
      %p121 = scmp.eq.s32.totalorder %s26, 3
      %p122 = por %p120, %p121
      %p124 = scmp.ne.s32.totalorder %s107, %s123
      %p125 = scmp.eq.s32.totalorder %s26, 0
      %p126 = por %p124, %p125
      %p127 = scmp.le.s32.totalorder 1, %s20
      %p128 = scmp.lt.s32.totalorder %s20, 5
      %p129 = pnand %p127, %p128
      %p130 = pneg %p129
      // Predicated region
      $region9: #{tpu_custom_call.1} parent=5 // pred_check
        _
      $region10: #{tpu_custom_call.1} parent=5 // pred_check_branch
        %132 = sbr.rel (%p129) target = $region12
      $region11: #{tpu_custom_call.1} parent=5 // pred_region
        %s133 = ssub.s32 %s20, 1
        // Predicated region
        $region13: #{tpu_custom_call.1} parent=11 // pred_check
          %p134 = pneg %p67
        $region14: #{tpu_custom_call.1} parent=11 // pred_check_branch
          %136 = sbr.rel (%p134) target = $region16
        $region15: #{tpu_custom_call.1} parent=11 // pred_region
          %s138 = ssub.s32 6144, 6144
          %139 = vsyncadd [#allocation6], %s138
          %s140 = sshll.u32 [#allocation5], 4
          %s141 = int_to_ptr.vmem [resolvable:$true] %s140
          %146 = dma.hbm_to_vmem [thread:$0]  %s1, 6144, %s141, [#allocation6], 384, 384, 24
        $region16: #{tpu_custom_call.1} parent=11 // pred_fallthru
          _
      $region12: #{tpu_custom_call.1} parent=5 // pred_fallthru
        _
      %p147 = scmp.lt.s32.totalorder %s20, 4
      // Predicated region
      $region17: #{tpu_custom_call.1} parent=5 // pred_check
        %p148 = pneg %p147
      $region18: #{tpu_custom_call.1} parent=5 // pred_check_branch
        %150 = sbr.rel (%p148) target = $region20
      $region19: #{tpu_custom_call.1} parent=5 // pred_region
        // Predicated region
        $region21: #{tpu_custom_call.1} parent=19 // pred_check
          %p151 = pneg %p40
        $region22: #{tpu_custom_call.1} parent=19 // pred_check_branch
          %153 = sbr.rel (%p151) target = $region24
        $region23: #{tpu_custom_call.1} parent=19 // pred_region
          %s154 = sand.u32 %s30, 1
          %s155 = scalar_lea.sflag [#allocation3], %s154
          %s156 = sand.u32 %s30, 1
          %s157 = smul.addr %s156, 128
          %s158 = scalar_lea.vmem [#allocation2], %s157
          %s160 = ssub.s32 2048, 2048
          %161 = vsyncadd %s155, %s160
          %s162 = smul.addr %s20, 16
          %s163 = smul.addr %s162, 128
          %s164 = scalar_lea.hbm %s0, %s163
          %s165 = sshll.u32 %s158, 4
          %s166 = int_to_ptr.vmem [resolvable:$true] %s165
          %171 = dma.hbm_to_vmem [thread:$0]  %s164, 2048, %s166, %s155, 128, 128, 8
        $region24: #{tpu_custom_call.1} parent=19 // pred_fallthru
          _
      $region20: #{tpu_custom_call.1} parent=5 // pred_fallthru
        _
      %p172 = scmp.le.s32.totalorder 1, %s20
      %p173 = scmp.lt.s32.totalorder %s20, 5
      %p174 = pnand %p172, %p173
      %p175 = pneg %p174
      // Predicated region
      $region25: #{tpu_custom_call.1} parent=5 // pred_check
        _
      $region26: #{tpu_custom_call.1} parent=5 // pred_check_branch
        %177 = sbr.rel (%p174) target = $region28
      $region27: #{tpu_custom_call.1} parent=5 // pred_region
        %s178 = ssub.s32 %s20, 1
        %s179 = sand.u32 %s33, 1
        %s180 = scalar_lea.sflag [#allocation3], %s179
        %s181 = sand.u32 %s33, 1
        %s182 = smul.addr %s181, 128
        %s183 = scalar_lea.vmem [#allocation2], %s182
        // Predicated region
        $region29: #{tpu_custom_call.1} parent=27 // pred_check
          %p184 = pneg %p46
        $region30: #{tpu_custom_call.1} parent=27 // pred_check_branch
          %186 = sbr.rel (%p184) target = $region32
        $region31: #{tpu_custom_call.1} parent=27 // pred_region
          %187 = dma.done %s180, 2048
        $region32: #{tpu_custom_call.1} parent=27 // pred_fallthru
          _
        // Predicated region
        $region33: #{tpu_custom_call.1} parent=27 // pred_check
          %p188 = pneg %p67
        $region34: #{tpu_custom_call.1} parent=27 // pred_check_branch
          %190 = sbr.rel (%p188) target = $region36
        $region35: #{tpu_custom_call.1} parent=27 // pred_region
          %191 = dma.done [#allocation6], 6144
        $region36: #{tpu_custom_call.1} parent=27 // pred_fallthru
          _
        %s192 = sand.u32 %s33, 1
        %s193 = scalar_lea.sflag [#allocation3], %s192
        %s194 = sand.u32 %s33, 1
        %s195 = smul.addr %s194, 128
        %s196 = scalar_lea.vmem [#allocation2], %s195
        %p197 = pneg %p46
        %p198 = pneg %p43
        %p199 = pneg %p67
        %p200 = pneg %p64
        %p201 = pneg %p93
        %p202 = pneg %p90
        %s203 = sand.u32 %s80, 1
        %s204 = scalar_lea.sflag [#allocation4], %s203
        %s205 = sand.u32 %s80, 1
        %s206 = smul.addr %s205, 128
        %s207 = scalar_lea.vmem [#allocation7], %s206
        %p208 = pneg %p119
        %p209 = pneg %p116
        %s210 = sand.u32 %s106, 1
        %s211 = scalar_lea.sflag [#allocation9], %s210
        %s212 = sand.u32 %s106, 1
        %s213 = smul.addr %s212, 128
        %s214 = scalar_lea.vmem [#allocation8], %s213
        %v215 = vld [vmem:[%s183] sm:$0xff]
        %v216 = vld [vmem:[%s183 + $0x8] sm:$0xff]
        %v217 = vld [vmem:[%s183 + $0x10] sm:$0xff]
        %v218 = vld [vmem:[%s183 + $0x18] sm:$0xff]
        %v219 = vld [vmem:[%s183 + $0x20] sm:$0xff]
        %v220 = vld [vmem:[%s183 + $0x28] sm:$0xff]
        %v221 = vld [vmem:[%s183 + $0x30] sm:$0xff]
        %v222 = vld [vmem:[%s183 + $0x38] sm:$0xff]
        %v223 = vld [vmem:[%s183 + $0x40] sm:$0xff]
        %v224 = vld [vmem:[%s183 + $0x48] sm:$0xff]
        %v225 = vld [vmem:[%s183 + $0x50] sm:$0xff]
        %v226 = vld [vmem:[%s183 + $0x58] sm:$0xff]
        %v227 = vld [vmem:[%s183 + $0x60] sm:$0xff]
        %v228 = vld [vmem:[%s183 + $0x68] sm:$0xff]
        %v229 = vld [vmem:[%s183 + $0x70] sm:$0xff]
        %v230 = vld [vmem:[%s183 + $0x78] sm:$0xff]
        %v231 = vld [vmem:[#allocation5] sm:$0xff]
        %v232 = vld [vmem:[#allocation5 + $0x8] sm:$0xff]
        %v233 = vld [vmem:[#allocation5 + $0x10] sm:$0xff]
        %v234 = vld [vmem:[#allocation5 + $0x18] sm:$0xff]
        %v235 = vld [vmem:[#allocation5 + $0x20] sm:$0xff]
        %v236 = vld [vmem:[#allocation5 + $0x28] sm:$0xff]
        %v237 = vld [vmem:[#allocation5 + $0x30] sm:$0xff]
        %v238 = vld [vmem:[#allocation5 + $0x38] sm:$0xff]
        %v239 = vld [vmem:[#allocation5 + $0x40] sm:$0xff]
        %v240 = vld [vmem:[#allocation5 + $0x48] sm:$0xff]
        %v241 = vld [vmem:[#allocation5 + $0x50] sm:$0xff]
        %v242 = vld [vmem:[#allocation5 + $0x58] sm:$0xff]
        %v243 = vld [vmem:[#allocation5 + $0x60] sm:$0xff]
        %v244 = vld [vmem:[#allocation5 + $0x68] sm:$0xff]
        %v245 = vld [vmem:[#allocation5 + $0x70] sm:$0xff]
        %v246 = vld [vmem:[#allocation5 + $0x78] sm:$0xff]
        %v247 = vld [vmem:[#allocation5 + $0x80] sm:$0xff]
        %v248 = vld [vmem:[#allocation5 + $0x88] sm:$0xff]
        %v249 = vld [vmem:[#allocation5 + $0x90] sm:$0xff]
        %v250 = vld [vmem:[#allocation5 + $0x98] sm:$0xff]
        %v251 = vld [vmem:[#allocation5 + $0xa0] sm:$0xff]
        %v252 = vld [vmem:[#allocation5 + $0xa8] sm:$0xff]
        %v253 = vld [vmem:[#allocation5 + $0xb0] sm:$0xff]
        %v254 = vld [vmem:[#allocation5 + $0xb8] sm:$0xff]
        %v255 = vld [vmem:[#allocation5 + $0xc0] sm:$0xff]
        %v256 = vld [vmem:[#allocation5 + $0xc8] sm:$0xff]
        %v257 = vld [vmem:[#allocation5 + $0xd0] sm:$0xff]
        %v258 = vld [vmem:[#allocation5 + $0xd8] sm:$0xff]
        %v259 = vld [vmem:[#allocation5 + $0xe0] sm:$0xff]
        %v260 = vld [vmem:[#allocation5 + $0xe8] sm:$0xff]
        %v261 = vld [vmem:[#allocation5 + $0xf0] sm:$0xff]
        %v262 = vld [vmem:[#allocation5 + $0xf8] sm:$0xff]
        %v263 = vld [vmem:[#allocation5 + $0x100] sm:$0xff]
        %v264 = vld [vmem:[#allocation5 + $0x108] sm:$0xff]
        %v265 = vld [vmem:[#allocation5 + $0x110] sm:$0xff]
        %v266 = vld [vmem:[#allocation5 + $0x118] sm:$0xff]
        %v267 = vld [vmem:[#allocation5 + $0x120] sm:$0xff]
        %v268 = vld [vmem:[#allocation5 + $0x128] sm:$0xff]
        %v269 = vld [vmem:[#allocation5 + $0x130] sm:$0xff]
        %v270 = vld [vmem:[#allocation5 + $0x138] sm:$0xff]
        %v271 = vld [vmem:[#allocation5 + $0x140] sm:$0xff]
        %v272 = vld [vmem:[#allocation5 + $0x148] sm:$0xff]
        %v273 = vld [vmem:[#allocation5 + $0x150] sm:$0xff]
        %v274 = vld [vmem:[#allocation5 + $0x158] sm:$0xff]
        %v275 = vld [vmem:[#allocation5 + $0x160] sm:$0xff]
        %v276 = vld [vmem:[#allocation5 + $0x168] sm:$0xff]
        %v277 = vld [vmem:[#allocation5 + $0x170] sm:$0xff]
        %v278 = vld [vmem:[#allocation5 + $0x178] sm:$0xff]
        %279 = vmatprep.subr.mxu0 %v232
        %280 = vmatpush1.msra.mxu0 %v231
        %281 = vmatprep.subr.mxu0 %v235
        %282 = vmatpush1.msra.mxu0 %v234
        %283 = vmatprep.subr.mxu0 %v238
        %284 = vmatpush1.msra.mxu0 %v237
        %285 = vmatprep.subr.mxu0 %v241
        %286 = vmatpush1.msra.mxu0 %v240
        %287 = vmatprep.subr.mxu0 %v244
        %288 = vmatpush1.msra.mxu0 %v243
        %289 = vmatprep.subr.mxu0 %v247
        %290 = vmatpush1.msra.mxu0 %v246
        %291 = vmatprep.subr.mxu0 %v250
        %292 = vmatpush1.msra.mxu0 %v249
        %293 = vmatprep.subr.mxu0 %v253
        %294 = vmatpush1.msra.mxu0 %v252
        %295 = vmatprep.subr.mxu0 %v256
        %296 = vmatpush1.msra.mxu0 %v255
        %297 = vmatprep.subr.mxu0 %v259
        %298 = vmatpush1.msra.mxu0 %v258
        %299 = vmatprep.subr.mxu0 %v262
        %300 = vmatpush1.msra.mxu0 %v261
        %301 = vmatprep.subr.mxu0 %v265
        %302 = vmatpush1.msra.mxu0 %v264
        %303 = vmatprep.subr.mxu0 %v268
        %304 = vmatpush1.msra.mxu0 %v267
        %305 = vmatprep.subr.mxu0 %v271
        %306 = vmatpush1.msra.mxu0 %v270
        %307 = vmatprep.subr.mxu0 %v274
        %308 = vmatpush1.msra.mxu0 %v273
        %309 = vmatprep.subr.mxu0 %v277
        %310 = vmatpush1.msra.mxu0 %v276
        %311 = vmatprep.subr.mxu0 0.0
        %312 = vmatpush1.msra.mxu0 0.0
        %313 = vmatprep.subr.mxu0 0.0
        %314 = vmatpush1.msra.mxu0 0.0
        %315 = vmatprep.subr.mxu0 0.0
        %316 = vmatpush1.msra.mxu0 0.0
        %317 = vmatprep.subr.mxu0 0.0
        %318 = vmatpush1.msra.mxu0 0.0
        %319 = vmatprep.subr.mxu0 0.0
        %320 = vmatpush1.msra.mxu0 0.0
        %321 = vmatprep.subr.mxu0 0.0
        %322 = vmatpush1.msra.mxu0 0.0
        %323 = vmatprep.subr.mxu0 0.0
        %324 = vmatpush1.msra.mxu0 0.0
        %325 = vmatprep.subr.mxu0 0.0
        %326 = vmatpush1.msra.mxu0 0.0
        %327 = vmatprep.subr.mxu0 0.0
        %328 = vmatpush1.msra.mxu0 0.0
        %329 = vmatprep.subr.mxu0 0.0
        %330 = vmatpush1.msra.mxu0 0.0
        %331 = vmatprep.subr.mxu0 0.0
        %332 = vmatpush1.msra.mxu0 0.0
        %333 = vmatprep.subr.mxu0 0.0
        %334 = vmatpush1.msra.mxu0 0.0
        %335 = vmatprep.subr.mxu0 0.0
        %336 = vmatpush1.msra.mxu0 0.0
        %337 = vmatprep.subr.mxu0 0.0
        %338 = vmatpush1.msra.mxu0 0.0
        %339 = vmatprep.subr.mxu0 0.0
        %340 = vmatpush1.msra.mxu0 0.0
        %341 = vmatprep.subr.mxu0 0.0
        %342 = vmatpush1.msra.mxu0 0.0
        %343 = vmatprep.mubr.f32.mxu0 0.0
        %344 = vmatmul.mubr.f32.gmra.mrb[0].mxu0 %v215
        %v345 = vpop.f32.mrb[0].mxu0
        %v346 = vadd.f32 0.0, %v345
        %v347 = vpop.f32.mrb[0].mxu0
        %v348 = vadd.f32 0.0, %v347
        %349 = vmatprep.mubr.f32.mxu0 0.0
        %350 = vmatmul.mubr.f32.gmra.mrb[0].mxu0 %v216
        %v351 = vpop.f32.mrb[0].mxu0
        %v352 = vadd.f32 0.0, %v351
        %v353 = vpop.f32.mrb[0].mxu0
        %v354 = vadd.f32 0.0, %v353
        %355 = vmatprep.mubr.f32.mxu0 0.0
        %356 = vmatmul.mubr.f32.gmra.mrb[0].mxu0 %v217
        %v357 = vpop.f32.mrb[0].mxu0
        %v358 = vadd.f32 0.0, %v357
        %v359 = vpop.f32.mrb[0].mxu0
        %v360 = vadd.f32 0.0, %v359
        %361 = vmatprep.mubr.f32.mxu0 0.0
        %362 = vmatmul.mubr.f32.gmra.mrb[0].mxu0 %v218
        %v363 = vpop.f32.mrb[0].mxu0
        %v364 = vadd.f32 0.0, %v363
        %v365 = vpop.f32.mrb[0].mxu0
        %v366 = vadd.f32 0.0, %v365
        %367 = vmatprep.mubr.f32.mxu0 0.0
        %368 = vmatmul.mubr.f32.gmra.mrb[0].mxu0 %v219
        %v369 = vpop.f32.mrb[0].mxu0
        %v370 = vadd.f32 0.0, %v369
        %v371 = vpop.f32.mrb[0].mxu0
        %v372 = vadd.f32 0.0, %v371
        %373 = vmatprep.mubr.f32.mxu0 0.0
        %374 = vmatmul.mubr.f32.gmra.mrb[0].mxu0 %v220
        %v375 = vpop.f32.mrb[0].mxu0
        %v376 = vadd.f32 0.0, %v375
        %v377 = vpop.f32.mrb[0].mxu0
        %v378 = vadd.f32 0.0, %v377
        %379 = vmatprep.mubr.f32.mxu0 0.0
        %380 = vmatmul.mubr.f32.gmra.mrb[0].mxu0 %v221
        %v381 = vpop.f32.mrb[0].mxu0
        %v382 = vadd.f32 0.0, %v381
        %v383 = vpop.f32.mrb[0].mxu0
        %v384 = vadd.f32 0.0, %v383
        %385 = vmatprep.mubr.f32.mxu0 0.0
        %386 = vmatmul.mubr.f32.gmra.mrb[0].mxu0 %v222
        %v387 = vpop.f32.mrb[0].mxu0
        %v388 = vadd.f32 0.0, %v387
        %v389 = vpop.f32.mrb[0].mxu0
        %v390 = vadd.f32 0.0, %v389
        %391 = vmatprep.mubr.f32.mxu0 0.0
        %392 = vmatmul.mubr.f32.gmra.mrb[0].mxu0 %v223
        %v393 = vpop.f32.mrb[0].mxu0
        %v394 = vadd.f32 0.0, %v393
        %v395 = vpop.f32.mrb[0].mxu0
        %v396 = vadd.f32 0.0, %v395
        %397 = vmatprep.mubr.f32.mxu0 0.0
        %398 = vmatmul.mubr.f32.gmra.mrb[0].mxu0 %v224
        %v399 = vpop.f32.mrb[0].mxu0
        %v400 = vadd.f32 0.0, %v399
        %v401 = vpop.f32.mrb[0].mxu0
        %v402 = vadd.f32 0.0, %v401
        %403 = vmatprep.mubr.f32.mxu0 0.0
        %404 = vmatmul.mubr.f32.gmra.mrb[0].mxu0 %v225
        %v405 = vpop.f32.mrb[0].mxu0
        %v406 = vadd.f32 0.0, %v405
        %v407 = vpop.f32.mrb[0].mxu0
        %v408 = vadd.f32 0.0, %v407
        %409 = vmatprep.mubr.f32.mxu0 0.0
        %410 = vmatmul.mubr.f32.gmra.mrb[0].mxu0 %v226
        %v411 = vpop.f32.mrb[0].mxu0
        %v412 = vadd.f32 0.0, %v411
        %v413 = vpop.f32.mrb[0].mxu0
        %v414 = vadd.f32 0.0, %v413
        %415 = vmatprep.mubr.f32.mxu0 0.0
        %416 = vmatmul.mubr.f32.gmra.mrb[0].mxu0 %v227
        %v417 = vpop.f32.mrb[0].mxu0
        %v418 = vadd.f32 0.0, %v417
        %v419 = vpop.f32.mrb[0].mxu0
        %v420 = vadd.f32 0.0, %v419
        %421 = vmatprep.mubr.f32.mxu0 0.0
        %422 = vmatmul.mubr.f32.gmra.mrb[0].mxu0 %v228
        %v423 = vpop.f32.mrb[0].mxu0
        %v424 = vadd.f32 0.0, %v423
        %v425 = vpop.f32.mrb[0].mxu0
        %v426 = vadd.f32 0.0, %v425
        %427 = vmatprep.mubr.f32.mxu0 0.0
        %428 = vmatmul.mubr.f32.gmra.mrb[0].mxu0 %v229
        %v429 = vpop.f32.mrb[0].mxu0
        %v430 = vadd.f32 0.0, %v429
        %v431 = vpop.f32.mrb[0].mxu0
        %v432 = vadd.f32 0.0, %v431
        %433 = vmatprep.mubr.f32.mxu0 0.0
        %434 = vmatmul.mubr.f32.gmra.mrb[0].mxu0 %v230
        %v435 = vpop.f32.mrb[0].mxu0
        %v436 = vadd.f32 0.0, %v435
        %v437 = vpop.f32.mrb[0].mxu0
        %v438 = vadd.f32 0.0, %v437
        %439 = vdwg.mxu0
        %440 = vmatprep.subr.mxu0 0.0
        %441 = vmatpush1.msra.mxu0 %v233
        %442 = vmatprep.subr.mxu0 0.0
        %443 = vmatpush1.msra.mxu0 %v236
        %444 = vmatprep.subr.mxu0 0.0
        %445 = vmatpush1.msra.mxu0 %v239
        %446 = vmatprep.subr.mxu0 0.0
        %447 = vmatpush1.msra.mxu0 %v242
        %448 = vmatprep.subr.mxu0 0.0
        %449 = vmatpush1.msra.mxu0 %v245
        %450 = vmatprep.subr.mxu0 0.0
        %451 = vmatpush1.msra.mxu0 %v248
        %452 = vmatprep.subr.mxu0 0.0
        %453 = vmatpush1.msra.mxu0 %v251
        %454 = vmatprep.subr.mxu0 0.0
        %455 = vmatpush1.msra.mxu0 %v254
        %456 = vmatprep.subr.mxu0 0.0
        %457 = vmatpush1.msra.mxu0 %v257
        %458 = vmatprep.subr.mxu0 0.0
        %459 = vmatpush1.msra.mxu0 %v260
        %460 = vmatprep.subr.mxu0 0.0
        %461 = vmatpush1.msra.mxu0 %v263
        %462 = vmatprep.subr.mxu0 0.0
        %463 = vmatpush1.msra.mxu0 %v266
        %464 = vmatprep.subr.mxu0 0.0
        %465 = vmatpush1.msra.mxu0 %v269
        %466 = vmatprep.subr.mxu0 0.0
        %467 = vmatpush1.msra.mxu0 %v272
        %468 = vmatprep.subr.mxu0 0.0
        %469 = vmatpush1.msra.mxu0 %v275
        %470 = vmatprep.subr.mxu0 0.0
        %471 = vmatpush1.msra.mxu0 %v278
        %472 = vmatprep.subr.mxu0 0.0
        %473 = vmatpush1.msra.mxu0 0.0
        %474 = vmatprep.subr.mxu0 0.0
        %475 = vmatpush1.msra.mxu0 0.0
        %476 = vmatprep.subr.mxu0 0.0
        %477 = vmatpush1.msra.mxu0 0.0
        %478 = vmatprep.subr.mxu0 0.0
        %479 = vmatpush1.msra.mxu0 0.0
        %480 = vmatprep.subr.mxu0 0.0
        %481 = vmatpush1.msra.mxu0 0.0
        %482 = vmatprep.subr.mxu0 0.0
        %483 = vmatpush1.msra.mxu0 0.0
        %484 = vmatprep.subr.mxu0 0.0
        %485 = vmatpush1.msra.mxu0 0.0
        %486 = vmatprep.subr.mxu0 0.0
        %487 = vmatpush1.msra.mxu0 0.0
        %488 = vmatprep.subr.mxu0 0.0
        %489 = vmatpush1.msra.mxu0 0.0
        %490 = vmatprep.subr.mxu0 0.0
        %491 = vmatpush1.msra.mxu0 0.0
        %492 = vmatprep.subr.mxu0 0.0
        %493 = vmatpush1.msra.mxu0 0.0
        %494 = vmatprep.subr.mxu0 0.0
        %495 = vmatpush1.msra.mxu0 0.0
        %496 = vmatprep.subr.mxu0 0.0
        %497 = vmatpush1.msra.mxu0 0.0
        %498 = vmatprep.subr.mxu0 0.0
        %499 = vmatpush1.msra.mxu0 0.0
        %500 = vmatprep.subr.mxu0 0.0
        %501 = vmatpush1.msra.mxu0 0.0
        %502 = vmatprep.subr.mxu0 0.0
        %503 = vmatpush1.msra.mxu0 0.0
        %504 = vmatprep.mubr.f32.mxu0 0.0
        %505 = vmatmul.mubr.f32.gmra.mrb[0].mxu0 %v215
        %v506 = vpop.f32.mrb[0].mxu0
        %v507 = vadd.f32 0.0, %v506
        %v508 = vpop.f32.mrb[0].mxu0
        %509 = vmatprep.mubr.f32.mxu0 0.0
        %510 = vmatmul.mubr.f32.gmra.mrb[0].mxu0 %v216
        %v511 = vpop.f32.mrb[0].mxu0
        %v512 = vadd.f32 0.0, %v511
        %v513 = vpop.f32.mrb[0].mxu0
        %514 = vmatprep.mubr.f32.mxu0 0.0
        %515 = vmatmul.mubr.f32.gmra.mrb[0].mxu0 %v217
        %v516 = vpop.f32.mrb[0].mxu0
        %v517 = vadd.f32 0.0, %v516
        %v518 = vpop.f32.mrb[0].mxu0
        %519 = vmatprep.mubr.f32.mxu0 0.0
        %520 = vmatmul.mubr.f32.gmra.mrb[0].mxu0 %v218
        %v521 = vpop.f32.mrb[0].mxu0
        %v522 = vadd.f32 0.0, %v521
        %v523 = vpop.f32.mrb[0].mxu0
        %524 = vmatprep.mubr.f32.mxu0 0.0
        %525 = vmatmul.mubr.f32.gmra.mrb[0].mxu0 %v219
        %v526 = vpop.f32.mrb[0].mxu0
        %v527 = vadd.f32 0.0, %v526
        %v528 = vpop.f32.mrb[0].mxu0
        %529 = vmatprep.mubr.f32.mxu0 0.0
        %530 = vmatmul.mubr.f32.gmra.mrb[0].mxu0 %v220
        %v531 = vpop.f32.mrb[0].mxu0
        %v532 = vadd.f32 0.0, %v531
        %v533 = vpop.f32.mrb[0].mxu0
        %534 = vmatprep.mubr.f32.mxu0 0.0
        %535 = vmatmul.mubr.f32.gmra.mrb[0].mxu0 %v221
        %v536 = vpop.f32.mrb[0].mxu0
        %v537 = vadd.f32 0.0, %v536
        %v538 = vpop.f32.mrb[0].mxu0
        %539 = vmatprep.mubr.f32.mxu0 0.0
        %540 = vmatmul.mubr.f32.gmra.mrb[0].mxu0 %v222
        %v541 = vpop.f32.mrb[0].mxu0
        %v542 = vadd.f32 0.0, %v541
        %v543 = vpop.f32.mrb[0].mxu0
        %544 = vmatprep.mubr.f32.mxu0 0.0
        %545 = vmatmul.mubr.f32.gmra.mrb[0].mxu0 %v223
        %v546 = vpop.f32.mrb[0].mxu0
        %v547 = vadd.f32 0.0, %v546
        %v548 = vpop.f32.mrb[0].mxu0
        %549 = vmatprep.mubr.f32.mxu0 0.0
        %550 = vmatmul.mubr.f32.gmra.mrb[0].mxu0 %v224
        %v551 = vpop.f32.mrb[0].mxu0
        %v552 = vadd.f32 0.0, %v551
        %v553 = vpop.f32.mrb[0].mxu0
        %554 = vmatprep.mubr.f32.mxu0 0.0
        %555 = vmatmul.mubr.f32.gmra.mrb[0].mxu0 %v225
        %v556 = vpop.f32.mrb[0].mxu0
        %v557 = vadd.f32 0.0, %v556
        %v558 = vpop.f32.mrb[0].mxu0
        %559 = vmatprep.mubr.f32.mxu0 0.0
        %560 = vmatmul.mubr.f32.gmra.mrb[0].mxu0 %v226
        %v561 = vpop.f32.mrb[0].mxu0
        %v562 = vadd.f32 0.0, %v561
        %v563 = vpop.f32.mrb[0].mxu0
        %564 = vmatprep.mubr.f32.mxu0 0.0
        %565 = vmatmul.mubr.f32.gmra.mrb[0].mxu0 %v227
        %v566 = vpop.f32.mrb[0].mxu0
        %v567 = vadd.f32 0.0, %v566
        %v568 = vpop.f32.mrb[0].mxu0
        %569 = vmatprep.mubr.f32.mxu0 0.0
        %570 = vmatmul.mubr.f32.gmra.mrb[0].mxu0 %v228
        %v571 = vpop.f32.mrb[0].mxu0
        %v572 = vadd.f32 0.0, %v571
        %v573 = vpop.f32.mrb[0].mxu0
        %574 = vmatprep.mubr.f32.mxu0 0.0
        %575 = vmatmul.mubr.f32.gmra.mrb[0].mxu0 %v229
        %v576 = vpop.f32.mrb[0].mxu0
        %v577 = vadd.f32 0.0, %v576
        %v578 = vpop.f32.mrb[0].mxu0
        %579 = vmatprep.mubr.f32.mxu0 0.0
        %580 = vmatmul.mubr.f32.gmra.mrb[0].mxu0 %v230
        %v581 = vpop.f32.mrb[0].mxu0
        %v582 = vadd.f32 0.0, %v581
        %v583 = vpop.f32.mrb[0].mxu0
        %584 = vdwg.mxu0
        %585 = vmatprep.subr.mxu0 0.0
        %586 = vmatpush1.xpose.msra.mxu0 %v348
        %587 = vmatprep.subr.mxu0 0.0
        %588 = vmatpush1.xpose.msra.mxu0 %v354
        %589 = vmatprep.subr.mxu0 0.0
        %590 = vmatpush1.xpose.msra.mxu0 %v360
        %591 = vmatprep.subr.mxu0 0.0
        %592 = vmatpush1.xpose.msra.mxu0 %v366
        %593 = vmatprep.subr.mxu0 0.0
        %594 = vmatpush1.xpose.msra.mxu0 %v372
        %595 = vmatprep.subr.mxu0 0.0
        %596 = vmatpush1.xpose.msra.mxu0 %v378
        %597 = vmatprep.subr.mxu0 0.0
        %598 = vmatpush1.xpose.msra.mxu0 %v384
        %599 = vmatprep.subr.mxu0 0.0
        %600 = vmatpush1.xpose.msra.mxu0 %v390
        %601 = vmatprep.subr.mxu0 0.0
        %602 = vmatpush1.xpose.msra.mxu0 %v396
        %603 = vmatprep.subr.mxu0 0.0
        %604 = vmatpush1.xpose.msra.mxu0 %v402
        %605 = vmatprep.subr.mxu0 0.0
        %606 = vmatpush1.xpose.msra.mxu0 %v408
        %607 = vmatprep.subr.mxu0 0.0
        %608 = vmatpush1.xpose.msra.mxu0 %v414
        %609 = vmatprep.subr.mxu0 0.0
        %610 = vmatpush1.xpose.msra.mxu0 %v420
        %611 = vmatprep.subr.mxu0 0.0
        %612 = vmatpush1.xpose.msra.mxu0 %v426
        %613 = vmatprep.subr.mxu0 0.0
        %614 = vmatpush1.xpose.msra.mxu0 %v432
        %615 = vmatprep.subr.mxu0 0.0
        %616 = vmatpush1.xpose.msra.mxu0 %v438
        %617 = vmatprep.subr.mxu0 0.0
        %618 = vmatpush1.xpose.msra.mxu0 0.0
        %619 = vmatprep.subr.mxu0 0.0
        %620 = vmatpush1.xpose.msra.mxu0 0.0
        %621 = vmatprep.subr.mxu0 0.0
        %622 = vmatpush1.xpose.msra.mxu0 0.0
        %623 = vmatprep.subr.mxu0 0.0
        %624 = vmatpush1.xpose.msra.mxu0 0.0
        %625 = vmatprep.subr.mxu0 0.0
        %626 = vmatpush1.xpose.msra.mxu0 0.0
        %627 = vmatprep.subr.mxu0 0.0
        %628 = vmatpush1.xpose.msra.mxu0 0.0
        %629 = vmatprep.subr.mxu0 0.0
        %630 = vmatpush1.xpose.msra.mxu0 0.0
        %631 = vmatprep.subr.mxu0 0.0
        %632 = vmatpush1.xpose.msra.mxu0 0.0
        %633 = vmatprep.subr.mxu0 0.0
        %634 = vmatpush1.xpose.msra.mxu0 0.0
        %635 = vmatprep.subr.mxu0 0.0
        %636 = vmatpush1.xpose.msra.mxu0 0.0
        %637 = vmatprep.subr.mxu0 0.0
        %638 = vmatpush1.xpose.msra.mxu0 0.0
        %639 = vmatprep.subr.mxu0 0.0
        %640 = vmatpush1.xpose.msra.mxu0 0.0
        %641 = vmatprep.subr.mxu0 0.0
        %642 = vmatpush1.xpose.msra.mxu0 0.0
        %643 = vmatprep.subr.mxu0 0.0
        %644 = vmatpush1.xpose.msra.mxu0 0.0
        %645 = vmatprep.subr.mxu0 0.0
        %646 = vmatpush1.xpose.msra.mxu0 0.0
        %647 = vmatprep.subr.mxu0 0.0
        %648 = vmatpush1.xpose.msra.mxu0 0.0
        %649 = vmatprep.mubr.f32.mxu0 0.0
        %650 = vmatmul.mubr.f32.gmra.mrb[0].mxu0 %v346
        %v651 = vpop.f32.mrb[0].mxu0
        %v652 = vadd.f32 0.0, %v651
        %v653 = vpop.f32.mrb[0].mxu0
        %654 = vmatprep.mubr.f32.mxu0 0.0
        %655 = vmatmul.mubr.f32.gmra.mrb[0].mxu0 %v352
        %v656 = vpop.f32.mrb[0].mxu0
        %v657 = vadd.f32 0.0, %v656
        %v658 = vpop.f32.mrb[0].mxu0
        %659 = vmatprep.mubr.f32.mxu0 0.0
        %660 = vmatmul.mubr.f32.gmra.mrb[0].mxu0 %v358
        %v661 = vpop.f32.mrb[0].mxu0
        %v662 = vadd.f32 0.0, %v661
        %v663 = vpop.f32.mrb[0].mxu0
        %664 = vmatprep.mubr.f32.mxu0 0.0
        %665 = vmatmul.mubr.f32.gmra.mrb[0].mxu0 %v364
        %v666 = vpop.f32.mrb[0].mxu0
        %v667 = vadd.f32 0.0, %v666
        %v668 = vpop.f32.mrb[0].mxu0
        %669 = vmatprep.mubr.f32.mxu0 0.0
        %670 = vmatmul.mubr.f32.gmra.mrb[0].mxu0 %v370
        %v671 = vpop.f32.mrb[0].mxu0
        %v672 = vadd.f32 0.0, %v671
        %v673 = vpop.f32.mrb[0].mxu0
        %674 = vmatprep.mubr.f32.mxu0 0.0
        %675 = vmatmul.mubr.f32.gmra.mrb[0].mxu0 %v376
        %v676 = vpop.f32.mrb[0].mxu0
        %v677 = vadd.f32 0.0, %v676
        %v678 = vpop.f32.mrb[0].mxu0
        %679 = vmatprep.mubr.f32.mxu0 0.0
        %680 = vmatmul.mubr.f32.gmra.mrb[0].mxu0 %v382
        %v681 = vpop.f32.mrb[0].mxu0
        %v682 = vadd.f32 0.0, %v681
        %v683 = vpop.f32.mrb[0].mxu0
        %684 = vmatprep.mubr.f32.mxu0 0.0
        %685 = vmatmul.mubr.f32.gmra.mrb[0].mxu0 %v388
        %v686 = vpop.f32.mrb[0].mxu0
        %v687 = vadd.f32 0.0, %v686
        %v688 = vpop.f32.mrb[0].mxu0
        %689 = vmatprep.mubr.f32.mxu0 0.0
        %690 = vmatmul.mubr.f32.gmra.mrb[0].mxu0 %v394
        %v691 = vpop.f32.mrb[0].mxu0
        %v692 = vadd.f32 0.0, %v691
        %v693 = vpop.f32.mrb[0].mxu0
        %694 = vmatprep.mubr.f32.mxu0 0.0
        %695 = vmatmul.mubr.f32.gmra.mrb[0].mxu0 %v400
        %v696 = vpop.f32.mrb[0].mxu0
        %v697 = vadd.f32 0.0, %v696
        %v698 = vpop.f32.mrb[0].mxu0
        %699 = vmatprep.mubr.f32.mxu0 0.0
        %700 = vmatmul.mubr.f32.gmra.mrb[0].mxu0 %v406
        %v701 = vpop.f32.mrb[0].mxu0
        %v702 = vadd.f32 0.0, %v701
        %v703 = vpop.f32.mrb[0].mxu0
        %704 = vmatprep.mubr.f32.mxu0 0.0
        %705 = vmatmul.mubr.f32.gmra.mrb[0].mxu0 %v412
        %v706 = vpop.f32.mrb[0].mxu0
        %v707 = vadd.f32 0.0, %v706
        %v708 = vpop.f32.mrb[0].mxu0
        %709 = vmatprep.mubr.f32.mxu0 0.0
        %710 = vmatmul.mubr.f32.gmra.mrb[0].mxu0 %v418
        %v711 = vpop.f32.mrb[0].mxu0
        %v712 = vadd.f32 0.0, %v711
        %v713 = vpop.f32.mrb[0].mxu0
        %714 = vmatprep.mubr.f32.mxu0 0.0
        %715 = vmatmul.mubr.f32.gmra.mrb[0].mxu0 %v424
        %v716 = vpop.f32.mrb[0].mxu0
        %v717 = vadd.f32 0.0, %v716
        %v718 = vpop.f32.mrb[0].mxu0
        %719 = vmatprep.mubr.f32.mxu0 0.0
        %720 = vmatmul.mubr.f32.gmra.mrb[0].mxu0 %v430
        %v721 = vpop.f32.mrb[0].mxu0
        %v722 = vadd.f32 0.0, %v721
        %v723 = vpop.f32.mrb[0].mxu0
        %724 = vmatprep.mubr.f32.mxu0 0.0
        %725 = vmatmul.mubr.f32.gmra.mrb[0].mxu0 %v436
        %v726 = vpop.f32.mrb[0].mxu0
        %v727 = vadd.f32 0.0, %v726
        %v728 = vpop.f32.mrb[0].mxu0
        %729 = vdwg.mxu0
        %730 = vmax.xlane.f32.xlu0 %v652
        %v731 = vpop.xlane.xlu0 %730
        %732 = vmax.xlane.f32.xlu0 %v657
        %v733 = vpop.xlane.xlu0 %732
        %734 = vmax.xlane.f32.xlu0 %v662
        %v735 = vpop.xlane.xlu0 %734
        %736 = vmax.xlane.f32.xlu0 %v667
        %v737 = vpop.xlane.xlu0 %736
        %738 = vmax.xlane.f32.xlu0 %v672
        %v739 = vpop.xlane.xlu0 %738
        %740 = vmax.xlane.f32.xlu0 %v677
        %v741 = vpop.xlane.xlu0 %740
        %742 = vmax.xlane.f32.xlu0 %v682
        %v743 = vpop.xlane.xlu0 %742
        %744 = vmax.xlane.f32.xlu0 %v687
        %v745 = vpop.xlane.xlu0 %744
        %746 = vmax.xlane.f32.xlu0 %v692
        %v747 = vpop.xlane.xlu0 %746
        %748 = vmax.xlane.f32.xlu0 %v697
        %v749 = vpop.xlane.xlu0 %748
        %750 = vmax.xlane.f32.xlu0 %v702
        %v751 = vpop.xlane.xlu0 %750
        %752 = vmax.xlane.f32.xlu0 %v707
        %v753 = vpop.xlane.xlu0 %752
        %754 = vmax.xlane.f32.xlu0 %v712
        %v755 = vpop.xlane.xlu0 %754
        %756 = vmax.xlane.f32.xlu0 %v717
        %v757 = vpop.xlane.xlu0 %756
        %758 = vmax.xlane.f32.xlu0 %v722
        %v759 = vpop.xlane.xlu0 %758
        %760 = vmax.xlane.f32.xlu0 %v727
        %v761 = vpop.xlane.xlu0 %760
        %v762 = vsub.f32 %v652, %v731
        %v763 = vsub.f32 %v657, %v733
        %v764 = vsub.f32 %v662, %v735
        %v765 = vsub.f32 %v667, %v737
        %v766 = vsub.f32 %v672, %v739
        %v767 = vsub.f32 %v677, %v741
        %v768 = vsub.f32 %v682, %v743
        %v769 = vsub.f32 %v687, %v745
        %v770 = vsub.f32 %v692, %v747
        %v771 = vsub.f32 %v697, %v749
        %v772 = vsub.f32 %v702, %v751
        %v773 = vsub.f32 %v707, %v753
        %v774 = vsub.f32 %v712, %v755
        %v775 = vsub.f32 %v717, %v757
        %v776 = vsub.f32 %v722, %v759
        %v777 = vsub.f32 %v727, %v761
        %v778 = vmul.f32 %v762, 1.442695
        %v779 = vpow.pop %v778
        %v780 = vmul.f32 %v763, 1.442695
        %v781 = vpow.pop %v780
        %v782 = vmul.f32 %v764, 1.442695
        %v783 = vpow.pop %v782
        %v784 = vmul.f32 %v765, 1.442695
        %v785 = vpow.pop %v784
        %v786 = vmul.f32 %v766, 1.442695
        %v787 = vpow.pop %v786
        %v788 = vmul.f32 %v767, 1.442695
        %v789 = vpow.pop %v788
        %v790 = vmul.f32 %v768, 1.442695
        %v791 = vpow.pop %v790
        %v792 = vmul.f32 %v769, 1.442695
        %v793 = vpow.pop %v792
        %v794 = vmul.f32 %v770, 1.442695
        %v795 = vpow.pop %v794
        %v796 = vmul.f32 %v771, 1.442695
        %v797 = vpow.pop %v796
        %v798 = vmul.f32 %v772, 1.442695
        %v799 = vpow.pop %v798
        %v800 = vmul.f32 %v773, 1.442695
        %v801 = vpow.pop %v800
        %v802 = vmul.f32 %v774, 1.442695
        %v803 = vpow.pop %v802
        %v804 = vmul.f32 %v775, 1.442695
        %v805 = vpow.pop %v804
        %v806 = vmul.f32 %v776, 1.442695
        %v807 = vpow.pop %v806
        %v808 = vmul.f32 %v777, 1.442695
        %v809 = vpow.pop %v808
        %810 = vadd.xlane.f32.xlu0 %v779
        %v811 = vpop.xlane.xlu0 %810
        %812 = vadd.xlane.f32.xlu0 %v781
        %v813 = vpop.xlane.xlu0 %812
        %814 = vadd.xlane.f32.xlu0 %v783
        %v815 = vpop.xlane.xlu0 %814
        %816 = vadd.xlane.f32.xlu0 %v785
        %v817 = vpop.xlane.xlu0 %816
        %818 = vadd.xlane.f32.xlu0 %v787
        %v819 = vpop.xlane.xlu0 %818
        %820 = vadd.xlane.f32.xlu0 %v789
        %v821 = vpop.xlane.xlu0 %820
        %822 = vadd.xlane.f32.xlu0 %v791
        %v823 = vpop.xlane.xlu0 %822
        %824 = vadd.xlane.f32.xlu0 %v793
        %v825 = vpop.xlane.xlu0 %824
        %826 = vadd.xlane.f32.xlu0 %v795
        %v827 = vpop.xlane.xlu0 %826
        %828 = vadd.xlane.f32.xlu0 %v797
        %v829 = vpop.xlane.xlu0 %828
        %830 = vadd.xlane.f32.xlu0 %v799
        %v831 = vpop.xlane.xlu0 %830
        %832 = vadd.xlane.f32.xlu0 %v801
        %v833 = vpop.xlane.xlu0 %832
        %834 = vadd.xlane.f32.xlu0 %v803
        %v835 = vpop.xlane.xlu0 %834
        %836 = vadd.xlane.f32.xlu0 %v805
        %v837 = vpop.xlane.xlu0 %836
        %838 = vadd.xlane.f32.xlu0 %v807
        %v839 = vpop.xlane.xlu0 %838
        %840 = vadd.xlane.f32.xlu0 %v809
        %v841 = vpop.xlane.xlu0 %840
        %v842 = vrcp.pop %v811
        %v843 = vrcp.pop %v813
        %v844 = vrcp.pop %v815
        %v845 = vrcp.pop %v817
        %v846 = vrcp.pop %v819
        %v847 = vrcp.pop %v821
        %v848 = vrcp.pop %v823
        %v849 = vrcp.pop %v825
        %v850 = vrcp.pop %v827
        %v851 = vrcp.pop %v829
        %v852 = vrcp.pop %v831
        %v853 = vrcp.pop %v833
        %v854 = vrcp.pop %v835
        %v855 = vrcp.pop %v837
        %v856 = vrcp.pop %v839
        %v857 = vrcp.pop %v841
        %v858 = vmul.f32 %v779, %v842
        %v859 = vmul.f32 %v781, %v843
        %v860 = vmul.f32 %v783, %v844
        %v861 = vmul.f32 %v785, %v845
        %v862 = vmul.f32 %v787, %v846
        %v863 = vmul.f32 %v789, %v847
        %v864 = vmul.f32 %v791, %v848
        %v865 = vmul.f32 %v793, %v849
        %v866 = vmul.f32 %v795, %v850
        %v867 = vmul.f32 %v797, %v851
        %v868 = vmul.f32 %v799, %v852
        %v869 = vmul.f32 %v801, %v853
        %v870 = vmul.f32 %v803, %v854
        %v871 = vmul.f32 %v805, %v855
        %v872 = vmul.f32 %v807, %v856
        %v873 = vmul.f32 %v809, %v857
        %874 = vmatprep.subr.mxu0 0.0
        %875 = vmatpush1.msra.mxu0 %v507
        %876 = vmatprep.subr.mxu0 0.0
        %877 = vmatpush1.msra.mxu0 %v512
        %878 = vmatprep.subr.mxu0 0.0
        %879 = vmatpush1.msra.mxu0 %v517
        %880 = vmatprep.subr.mxu0 0.0
        %881 = vmatpush1.msra.mxu0 %v522
        %882 = vmatprep.subr.mxu0 0.0
        %883 = vmatpush1.msra.mxu0 %v527
        %884 = vmatprep.subr.mxu0 0.0
        %885 = vmatpush1.msra.mxu0 %v532
        %886 = vmatprep.subr.mxu0 0.0
        %887 = vmatpush1.msra.mxu0 %v537
        %888 = vmatprep.subr.mxu0 0.0
        %889 = vmatpush1.msra.mxu0 %v542
        %890 = vmatprep.subr.mxu0 0.0
        %891 = vmatpush1.msra.mxu0 %v547
        %892 = vmatprep.subr.mxu0 0.0
        %893 = vmatpush1.msra.mxu0 %v552
        %894 = vmatprep.subr.mxu0 0.0
        %895 = vmatpush1.msra.mxu0 %v557
        %896 = vmatprep.subr.mxu0 0.0
        %897 = vmatpush1.msra.mxu0 %v562
        %898 = vmatprep.subr.mxu0 0.0
        %899 = vmatpush1.msra.mxu0 %v567
        %900 = vmatprep.subr.mxu0 0.0
        %901 = vmatpush1.msra.mxu0 %v572
        %902 = vmatprep.subr.mxu0 0.0
        %903 = vmatpush1.msra.mxu0 %v577
        %904 = vmatprep.subr.mxu0 0.0
        %905 = vmatpush1.msra.mxu0 %v582
        %906 = vmatprep.subr.mxu0 0.0
        %907 = vmatpush1.msra.mxu0 0.0
        %908 = vmatprep.subr.mxu0 0.0
        %909 = vmatpush1.msra.mxu0 0.0
        %910 = vmatprep.subr.mxu0 0.0
        %911 = vmatpush1.msra.mxu0 0.0
        %912 = vmatprep.subr.mxu0 0.0
        %913 = vmatpush1.msra.mxu0 0.0
        %914 = vmatprep.subr.mxu0 0.0
        %915 = vmatpush1.msra.mxu0 0.0
        %916 = vmatprep.subr.mxu0 0.0
        %917 = vmatpush1.msra.mxu0 0.0
        %918 = vmatprep.subr.mxu0 0.0
        %919 = vmatpush1.msra.mxu0 0.0
        %920 = vmatprep.subr.mxu0 0.0
        %921 = vmatpush1.msra.mxu0 0.0
        %922 = vmatprep.subr.mxu0 0.0
        %923 = vmatpush1.msra.mxu0 0.0
        %924 = vmatprep.subr.mxu0 0.0
        %925 = vmatpush1.msra.mxu0 0.0
        %926 = vmatprep.subr.mxu0 0.0
        %927 = vmatpush1.msra.mxu0 0.0
        %928 = vmatprep.subr.mxu0 0.0
        %929 = vmatpush1.msra.mxu0 0.0
        %930 = vmatprep.subr.mxu0 0.0
        %931 = vmatpush1.msra.mxu0 0.0
        %932 = vmatprep.subr.mxu0 0.0
        %933 = vmatpush1.msra.mxu0 0.0
        %934 = vmatprep.subr.mxu0 0.0
        %935 = vmatpush1.msra.mxu0 0.0
        %936 = vmatprep.subr.mxu0 0.0
        %937 = vmatpush1.msra.mxu0 0.0
        %938 = vmatprep.mubr.f32.mxu0 0.0
        %939 = vmatmul.mubr.f32.gmra.mrb[0].mxu0 %v858
        %v940 = vpop.f32.mrb[0].mxu0
        %v941 = vadd.f32 0.0, %v940
        %v942 = vpop.f32.mrb[0].mxu0
        %943 = vmatprep.mubr.f32.mxu0 0.0
        %944 = vmatmul.mubr.f32.gmra.mrb[0].mxu0 %v859
        %v945 = vpop.f32.mrb[0].mxu0
        %v946 = vadd.f32 0.0, %v945
        %v947 = vpop.f32.mrb[0].mxu0
        %948 = vmatprep.mubr.f32.mxu0 0.0
        %949 = vmatmul.mubr.f32.gmra.mrb[0].mxu0 %v860
        %v950 = vpop.f32.mrb[0].mxu0
        %v951 = vadd.f32 0.0, %v950
        %v952 = vpop.f32.mrb[0].mxu0
        %953 = vmatprep.mubr.f32.mxu0 0.0
        %954 = vmatmul.mubr.f32.gmra.mrb[0].mxu0 %v861
        %v955 = vpop.f32.mrb[0].mxu0
        %v956 = vadd.f32 0.0, %v955
        %v957 = vpop.f32.mrb[0].mxu0
        %958 = vmatprep.mubr.f32.mxu0 0.0
        %959 = vmatmul.mubr.f32.gmra.mrb[0].mxu0 %v862
        %v960 = vpop.f32.mrb[0].mxu0
        %v961 = vadd.f32 0.0, %v960
        %v962 = vpop.f32.mrb[0].mxu0
        %963 = vmatprep.mubr.f32.mxu0 0.0
        %964 = vmatmul.mubr.f32.gmra.mrb[0].mxu0 %v863
        %v965 = vpop.f32.mrb[0].mxu0
        %v966 = vadd.f32 0.0, %v965
        %v967 = vpop.f32.mrb[0].mxu0
        %968 = vmatprep.mubr.f32.mxu0 0.0
        %969 = vmatmul.mubr.f32.gmra.mrb[0].mxu0 %v864
        %v970 = vpop.f32.mrb[0].mxu0
        %v971 = vadd.f32 0.0, %v970
        %v972 = vpop.f32.mrb[0].mxu0
        %973 = vmatprep.mubr.f32.mxu0 0.0
        %974 = vmatmul.mubr.f32.gmra.mrb[0].mxu0 %v865
        %v975 = vpop.f32.mrb[0].mxu0
        %v976 = vadd.f32 0.0, %v975
        %v977 = vpop.f32.mrb[0].mxu0
        %978 = vmatprep.mubr.f32.mxu0 0.0
        %979 = vmatmul.mubr.f32.gmra.mrb[0].mxu0 %v866
        %v980 = vpop.f32.mrb[0].mxu0
        %v981 = vadd.f32 0.0, %v980
        %v982 = vpop.f32.mrb[0].mxu0
        %983 = vmatprep.mubr.f32.mxu0 0.0
        %984 = vmatmul.mubr.f32.gmra.mrb[0].mxu0 %v867
        %v985 = vpop.f32.mrb[0].mxu0
        %v986 = vadd.f32 0.0, %v985
        %v987 = vpop.f32.mrb[0].mxu0
        %988 = vmatprep.mubr.f32.mxu0 0.0
        %989 = vmatmul.mubr.f32.gmra.mrb[0].mxu0 %v868
        %v990 = vpop.f32.mrb[0].mxu0
        %v991 = vadd.f32 0.0, %v990
        %v992 = vpop.f32.mrb[0].mxu0
        %993 = vmatprep.mubr.f32.mxu0 0.0
        %994 = vmatmul.mubr.f32.gmra.mrb[0].mxu0 %v869
        %v995 = vpop.f32.mrb[0].mxu0
        %v996 = vadd.f32 0.0, %v995
        %v997 = vpop.f32.mrb[0].mxu0
        %998 = vmatprep.mubr.f32.mxu0 0.0
        %999 = vmatmul.mubr.f32.gmra.mrb[0].mxu0 %v870
        %v1000 = vpop.f32.mrb[0].mxu0
        %v1001 = vadd.f32 0.0, %v1000
        %v1002 = vpop.f32.mrb[0].mxu0
        %1003 = vmatprep.mubr.f32.mxu0 0.0
        %1004 = vmatmul.mubr.f32.gmra.mrb[0].mxu0 %v871
        %v1005 = vpop.f32.mrb[0].mxu0
        %v1006 = vadd.f32 0.0, %v1005
        %v1007 = vpop.f32.mrb[0].mxu0
        %1008 = vmatprep.mubr.f32.mxu0 0.0
        %1009 = vmatmul.mubr.f32.gmra.mrb[0].mxu0 %v872
        %v1010 = vpop.f32.mrb[0].mxu0
        %v1011 = vadd.f32 0.0, %v1010
        %v1012 = vpop.f32.mrb[0].mxu0
        %1013 = vmatprep.mubr.f32.mxu0 0.0
        %1014 = vmatmul.mubr.f32.gmra.mrb[0].mxu0 %v873
        %v1015 = vpop.f32.mrb[0].mxu0
        %v1016 = vadd.f32 0.0, %v1015
        %v1017 = vpop.f32.mrb[0].mxu0
        %1018 = vdwg.mxu0
        %1019 = vst [vmem:[%s207] sm:$0xff] %v941
        %1020 = vst [vmem:[%s207 + $0x8] sm:$0xff] %v946
        %1021 = vst [vmem:[%s207 + $0x10] sm:$0xff] %v951
        %1022 = vst [vmem:[%s207 + $0x18] sm:$0xff] %v956
        %1023 = vst [vmem:[%s207 + $0x20] sm:$0xff] %v961
        %1024 = vst [vmem:[%s207 + $0x28] sm:$0xff] %v966
        %1025 = vst [vmem:[%s207 + $0x30] sm:$0xff] %v971
        %1026 = vst [vmem:[%s207 + $0x38] sm:$0xff] %v976
        %1027 = vst [vmem:[%s207 + $0x40] sm:$0xff] %v981
        %1028 = vst [vmem:[%s207 + $0x48] sm:$0xff] %v986
        %1029 = vst [vmem:[%s207 + $0x50] sm:$0xff] %v991
        %1030 = vst [vmem:[%s207 + $0x58] sm:$0xff] %v996
        %1031 = vst [vmem:[%s207 + $0x60] sm:$0xff] %v1001
        %1032 = vst [vmem:[%s207 + $0x68] sm:$0xff] %v1006
        %1033 = vst [vmem:[%s207 + $0x70] sm:$0xff] %v1011
        %1034 = vst [vmem:[%s207 + $0x78] sm:$0xff] %v1016
        %1035 = vst [vmem:[%s214] sm:$0xff] %v858
        %1036 = vst [vmem:[%s214 + $0x8] sm:$0xff] %v859
        %1037 = vst [vmem:[%s214 + $0x10] sm:$0xff] %v860
        %1038 = vst [vmem:[%s214 + $0x18] sm:$0xff] %v861
        %1039 = vst [vmem:[%s214 + $0x20] sm:$0xff] %v862
        %1040 = vst [vmem:[%s214 + $0x28] sm:$0xff] %v863
        %1041 = vst [vmem:[%s214 + $0x30] sm:$0xff] %v864
        %1042 = vst [vmem:[%s214 + $0x38] sm:$0xff] %v865
        %1043 = vst [vmem:[%s214 + $0x40] sm:$0xff] %v866
        %1044 = vst [vmem:[%s214 + $0x48] sm:$0xff] %v867
        %1045 = vst [vmem:[%s214 + $0x50] sm:$0xff] %v868
        %1046 = vst [vmem:[%s214 + $0x58] sm:$0xff] %v869
        %1047 = vst [vmem:[%s214 + $0x60] sm:$0xff] %v870
        %1048 = vst [vmem:[%s214 + $0x68] sm:$0xff] %v871
        %1049 = vst [vmem:[%s214 + $0x70] sm:$0xff] %v872
        %1050 = vst [vmem:[%s214 + $0x78] sm:$0xff] %v873
        %s1051 = sand.u32 %s80, 1
        %s1052 = scalar_lea.sflag [#allocation4], %s1051
        %s1053 = sand.u32 %s80, 1
        %s1054 = smul.addr %s1053, 128
        %s1055 = scalar_lea.vmem [#allocation7], %s1054
        %s1056 = sand.u32 %s106, 1
        %s1057 = scalar_lea.sflag [#allocation9], %s1056
        %s1058 = sand.u32 %s106, 1
        %s1059 = smul.addr %s1058, 128
        %s1060 = scalar_lea.vmem [#allocation8], %s1059
        // Predicated region
        $region37: #{tpu_custom_call.1} parent=27 // pred_check
          %p1061 = pneg %p90
        $region38: #{tpu_custom_call.1} parent=27 // pred_check_branch
          %1063 = sbr.rel (%p1061) target = $region40
        $region39: #{tpu_custom_call.1} parent=27 // pred_region
          %s1065 = ssub.s32 2048, 2048
          %1066 = vsyncadd %s1052, %s1065
          %s1067 = smul.addr %s25, 16
          %s1068 = smul.addr %s1067, 128
          %s1069 = scalar_lea.hbm %s2, %s1068
          %s1070 = sshll.u32 %s1055, 4
          %s1071 = int_to_ptr.vmem [resolvable:$true] %s1070
          %1076 = dma.vmem_to_hbm [thread:$0]  %s1071, 2048, %s1069, %s1052, 128, 128, 8
        $region40: #{tpu_custom_call.1} parent=27 // pred_fallthru
          _
        // Predicated region
        $region41: #{tpu_custom_call.1} parent=27 // pred_check
          %p1077 = pneg %p116
        $region42: #{tpu_custom_call.1} parent=27 // pred_check_branch
          %1079 = sbr.rel (%p1077) target = $region44
        $region43: #{tpu_custom_call.1} parent=27 // pred_region
          %s1081 = ssub.s32 2048, 2048
          %1082 = vsyncadd %s1057, %s1081
          %s1083 = smul.addr %s25, 16
          %s1084 = smul.addr %s1083, 128
          %s1085 = scalar_lea.hbm %s3, %s1084
          %s1086 = sshll.u32 %s1060, 4
          %s1087 = int_to_ptr.vmem [resolvable:$true] %s1086
          %1092 = dma.vmem_to_hbm [thread:$0]  %s1087, 2048, %s1085, %s1057, 128, 128, 8
        $region44: #{tpu_custom_call.1} parent=27 // pred_fallthru
          _
      $region28: #{tpu_custom_call.1} parent=5 // pred_fallthru
        _
      %p1093 = scmp.le.s32.totalorder 2, %s20
      // Predicated region
      $region45: #{tpu_custom_call.1} parent=5 // pred_check
        %p1094 = pneg %p1093
      $region46: #{tpu_custom_call.1} parent=5 // pred_check_branch
        %1096 = sbr.rel (%p1094) target = $region48
      $region47: #{tpu_custom_call.1} parent=5 // pred_region
        %s1097 = ssub.s32 %s20, 2
        // Predicated region
        $region49: #{tpu_custom_call.1} parent=47 // pred_check
          %p1098 = pneg %p96
        $region50: #{tpu_custom_call.1} parent=47 // pred_check_branch
          %1100 = sbr.rel (%p1098) target = $region52
        $region51: #{tpu_custom_call.1} parent=47 // pred_region
          %s1101 = sand.u32 %s81, 1
          %s1102 = scalar_lea.sflag [#allocation4], %s1101
          %s1103 = sand.u32 %s81, 1
          %s1104 = smul.addr %s1103, 128
          %s1105 = scalar_lea.vmem [#allocation7], %s1104
          %1106 = dma.done %s1102, 2048
        $region52: #{tpu_custom_call.1} parent=47 // pred_fallthru
          _
        // Predicated region
        $region53: #{tpu_custom_call.1} parent=47 // pred_check
          %p1107 = pneg %p122
        $region54: #{tpu_custom_call.1} parent=47 // pred_check_branch
          %1109 = sbr.rel (%p1107) target = $region56
        $region55: #{tpu_custom_call.1} parent=47 // pred_region
          %s1110 = sand.u32 %s107, 1
          %s1111 = scalar_lea.sflag [#allocation9], %s1110
          %s1112 = sand.u32 %s107, 1
          %s1113 = smul.addr %s1112, 128
          %s1114 = scalar_lea.vmem [#allocation8], %s1113
          %1115 = dma.done %s1111, 2048
        $region56: #{tpu_custom_call.1} parent=47 // pred_fallthru
          _
      $region48: #{tpu_custom_call.1} parent=5 // pred_fallthru
        _
    $region6: #{tpu_custom_call.1} parent=1 // loop_footer
      %s24 = sadd.s32 1, %s20
    $region7: #{tpu_custom_call.1} parent=1 // loop_footer_branch
      %19 = sbr.rel target = $region3
    $region8: #{tpu_custom_call.1} parent=1 // loop_exit
      _
    %1116 = vsyncpa [#allocation3], 1
    %s1117 = scalar_lea.sflag [#allocation3], 1
    %1118 = vsyncpa %s1117, 1
    %1119 = vsyncpa [#allocation6], 1
    %1120 = vsyncpa [#allocation4], 1
    %s1121 = scalar_lea.sflag [#allocation4], 1
    %1122 = vsyncpa %s1121, 1
    %1123 = vsyncpa [#allocation9], 1
    %s1124 = scalar_lea.sflag [#allocation9], 1
    %1125 = vsyncpa %s1124, 1

</llo_original>
